<compile_context>
chip_gen: v7x
topology: tpu7x:2x2x1
jax: 0.10.0
libtpu: 0.0.40
codegen_flags: <defaults>
</compile_context>

<pallas_src>
import functools
import math

import jax
import jax.numpy as jnp
from jax import lax
from jax.experimental import pallas as pl
from jax.experimental.pallas import tpu as pltpu


# --------------------------------------------------------------------------
# Fused kernel: projections + per-head attention + output projection,
# one grid step per batch element.
# --------------------------------------------------------------------------
def _mha_fused_kernel(xq_ref, xk_ref, xv_ref,
                      wq_ref, wk_ref, wv_ref,
                      wo_ref, bo_ref, o_ref, *, h, d_k):
    in_dtype = xq_ref.dtype
    s_q = xq_ref.shape[0]
    d_model = wq_ref.shape[1]

    # Q/K/V projections: native-dtype MXU operands, f32 accumulation.
    q = jnp.dot(xq_ref[...], wq_ref[...], preferred_element_type=jnp.float32)
    k = jnp.dot(xk_ref[...], wk_ref[...], preferred_element_type=jnp.float32)
    v = jnp.dot(xv_ref[...], wv_ref[...], preferred_element_type=jnp.float32)

    # Fold the softmax scale into q once (cheaper than scaling each (S,S)
    # score tile per head).  Feed the attention matmuls in the input dtype
    # (bf16 stays bf16 on the MXU); softmax math stays in f32 below.
    scale = 1.0 / math.sqrt(d_k)
    q = (q * scale).astype(in_dtype)
    k = k.astype(in_dtype)
    v = v.astype(in_dtype)

    nt_dims = (((1,), (1,)), ((), ()))          # contract last axes (NT matmul)
    acc = jnp.zeros((s_q, d_model), jnp.float32)

    # Heads are static lane slices; h is small and static, so unroll.
    for head in range(h):
        lo, hi = head * d_k, (head + 1) * d_k
        qh, kh, vh = q[:, lo:hi], k[:, lo:hi], v[:, lo:hi]

        scores = lax.dot_general(qh, kh, nt_dims,
                                 preferred_element_type=jnp.float32)
        # Numerically-stable softmax over the key axis (f32).
        scores = scores - jnp.max(scores, axis=-1, keepdims=True)
        p = jnp.exp(scores)
        # TODO(synk): pl.reciprocal(..., approx=True) is a free EUP-slot win when
        # the accuracy budget allows; exact form kept for the 1e-4 check below.
        p = p * pl.reciprocal(jnp.sum(p, axis=-1, keepdims=True), approx=False)

        ctx_h = jnp.dot(p.astype(in_dtype), vh,
                        preferred_element_type=jnp.float32)        # (s_q, d_k)

        # Fold output projection per head: ctx @ Wo == sum_h ctx_h @ Wo[head rows].
        wo_h = wo_ref[lo:hi, :]                                     # (d_k, d_model)
        acc = acc + jnp.dot(ctx_h.astype(in_dtype), wo_h,
                            preferred_element_type=jnp.float32)

    o_ref[...] = (acc + bo_ref[...].astype(jnp.float32)).astype(o_ref.dtype)


# --------------------------------------------------------------------------
# Wrapper: single pallas_call, grid over batch ("parallel").
# --------------------------------------------------------------------------
def multi_headed_attention(params, query, key, value, h, d_k):
    """query: (B, Sq, F), key/value: (B, Skv, F) -> (B, Sq, d_model)."""
    B, s_q, F = query.shape
    _, s_kv, _ = key.shape
    d_model = h * d_k
    bo2 = params["bo"].reshape(1, d_model)

    q_spec = pl.BlockSpec((None, s_q, F), lambda b: (b, 0, 0))
    kv_spec = pl.BlockSpec((None, s_kv, F), lambda b: (b, 0, 0))
    w_spec = pl.BlockSpec((F, d_model), lambda b: (0, 0))        # resident weights
    wo_spec = pl.BlockSpec((d_model, d_model), lambda b: (0, 0))
    bo_spec = pl.BlockSpec((1, d_model), lambda b: (0, 0))

    kernel = functools.partial(_mha_fused_kernel, h=h, d_k=d_k)
    return pl.pallas_call(
        kernel,
        out_shape=jax.ShapeDtypeStruct((B, s_q, d_model), query.dtype),
        grid=(B,),
        in_specs=[q_spec, kv_spec, kv_spec, w_spec, w_spec, w_spec, wo_spec, bo_spec],
        out_specs=pl.BlockSpec((None, s_q, d_model), lambda b: (b, 0, 0)),
        compiler_params=pltpu.CompilerParams(dimension_semantics=("parallel",)),
    )(query, key, value, params["wq"], params["wk"], params["wv"],
      params["wo"], bo2)


# --------------------------------------------------------------------------
# Reference (plain JAX) for sanity check
# --------------------------------------------------------------------------
def reference_mha(params, query, key, value, h, d_k):
    B, S, _ = query.shape
    d_model = h * d_k

    def proj(x, w):
        y = x @ w
        return jnp.transpose(y.reshape(B, -1, h, d_k), (0, 2, 1, 3))

    q, k, v = (proj(query, params["wq"]), proj(key, params["wk"]),
               proj(value, params["wv"]))
    scores = jnp.einsum("bhqd,bhkd->bhqk", q, k) / math.sqrt(d_k)
    p = jax.nn.softmax(scores, axis=-1)
    ctx = jnp.einsum("bhqk,bhkd->bhqd", p, v)
    ctx = jnp.transpose(ctx, (0, 2, 1, 3)).reshape(B, S, d_model)
    return ctx @ params["wo"] + params["bo"]


# --------------------------------------------------------------------------
# Main
# --------------------------------------------------------------------------
if __name__ == "__main__":
    B, S = 2, 8
    in_features = 32
    h, d_model = 4, 32
    d_k = d_model // h

    key0 = jax.random.PRNGKey(0)
    k_q, k_k, k_v, k_wq, k_wk, k_wv, k_wo, k_bo = jax.random.split(key0, 8)

    # Weights stored as (in, out) so kernels compute x @ W directly.
    params = {
        "wq": jax.random.normal(k_wq, (in_features, d_model), jnp.float32) * 0.1,
        "wk": jax.random.normal(k_wk, (in_features, d_model), jnp.float32) * 0.1,
        "wv": jax.random.normal(k_wv, (in_features, d_model), jnp.float32) * 0.1,
        "wo": jax.random.normal(k_wo, (d_model, d_model), jnp.float32) * 0.1,
        "bo": jax.random.normal(k_bo, (d_model,), jnp.float32) * 0.1,
    }

    query = jax.random.normal(k_q, (B, S, in_features), jnp.float32)
    key_in = jax.random.normal(k_k, (B, S, in_features), jnp.float32)
    value = jax.random.normal(k_v, (B, S, in_features), jnp.float32)

    fwd = jax.jit(functools.partial(multi_headed_attention, h=h, d_k=d_k))
    out = jax.block_until_ready(fwd(params, query, key_in, value))

    ref = reference_mha(params, query, key_in, value, h, d_k)
    assert out.shape == (B, S, d_model)
    assert jnp.allclose(out, ref, atol=1e-4, rtol=1e-4)

    print("KERNEL_OK")
</pallas_src>

<mosaic_0001>
module attributes {stable_mosaic.version = 11 : i64} {
  func.func @_mha_fused_kernel(%arg0: i32, %arg1: memref<1x8x32xf32, #tpu.memory_space<vmem>>, %arg2: memref<1x8x32xf32, #tpu.memory_space<vmem>>, %arg3: memref<1x8x32xf32, #tpu.memory_space<vmem>>, %arg4: memref<32x32xf32, #tpu.memory_space<vmem>>, %arg5: memref<32x32xf32, #tpu.memory_space<vmem>>, %arg6: memref<32x32xf32, #tpu.memory_space<vmem>>, %arg7: memref<32x32xf32, #tpu.memory_space<vmem>>, %arg8: memref<1x32xf32, #tpu.memory_space<vmem>>, %arg9: memref<1x8x32xf32, #tpu.memory_space<vmem>>) attributes {dimension_semantics = [#tpu.dimension_semantics<parallel>], iteration_bounds = array<i64: 2>, scalar_prefetch = 0 : i64, scratch_operands = 0 : i64, tpu.core_type = #tpu.core_type<tc>, window_params = [{transform_indices = @transform_0, window_bounds = array<i64: 1, 8, 32>}, {transform_indices = @transform_1, window_bounds = array<i64: 1, 8, 32>}, {transform_indices = @transform_2, window_bounds = array<i64: 1, 8, 32>}, {pipeline_mode = #tpu.pipeline_mode<synchronous>, transform_indices = @transform_3, window_bounds = array<i64: 32, 32>}, {pipeline_mode = #tpu.pipeline_mode<synchronous>, transform_indices = @transform_4, window_bounds = array<i64: 32, 32>}, {pipeline_mode = #tpu.pipeline_mode<synchronous>, transform_indices = @transform_5, window_bounds = array<i64: 32, 32>}, {pipeline_mode = #tpu.pipeline_mode<synchronous>, transform_indices = @transform_6, window_bounds = array<i64: 32, 32>}, {pipeline_mode = #tpu.pipeline_mode<synchronous>, transform_indices = @transform_7, window_bounds = array<i64: 1, 32>}, {transform_indices = @transform_8, window_bounds = array<i64: 1, 8, 32>}]} {
    %c0 = arith.constant 0 : index
    %c0_0 = arith.constant 0 : index
    %c0_1 = arith.constant 0 : index
    %0 = vector.load %arg1[%c0, %c0_0, %c0_1] : memref<1x8x32xf32, #tpu.memory_space<vmem>>, vector<1x8x32xf32>
    %1 = vector.shape_cast %0 : vector<1x8x32xf32> to vector<8x32xf32>
    %c0_2 = arith.constant 0 : index
    %c0_3 = arith.constant 0 : index
    %2 = vector.load %arg4[%c0_2, %c0_3] : memref<32x32xf32, #tpu.memory_space<vmem>>, vector<32x32xf32>
    %cst = arith.constant dense<0.000000e+00> : vector<8x32xf32>
    %3 = tpu.matmul %1, %2, %cst {dimension_numbers = #tpu.dot_dimension_numbers<[1], [0], [0], [1], [0, 0, 1, 1], [], []>} : vector<8x32xf32>, vector<32x32xf32>, vector<8x32xf32> -> vector<8x32xf32>
    %c0_4 = arith.constant 0 : index
    %c0_5 = arith.constant 0 : index
    %c0_6 = arith.constant 0 : index
    %4 = vector.load %arg2[%c0_4, %c0_5, %c0_6] : memref<1x8x32xf32, #tpu.memory_space<vmem>>, vector<1x8x32xf32>
    %5 = vector.shape_cast %4 : vector<1x8x32xf32> to vector<8x32xf32>
    %c0_7 = arith.constant 0 : index
    %c0_8 = arith.constant 0 : index
    %6 = vector.load %arg5[%c0_7, %c0_8] : memref<32x32xf32, #tpu.memory_space<vmem>>, vector<32x32xf32>
    %cst_9 = arith.constant dense<0.000000e+00> : vector<8x32xf32>
    %7 = tpu.matmul %5, %6, %cst_9 {dimension_numbers = #tpu.dot_dimension_numbers<[1], [0], [0], [1], [0, 0, 1, 1], [], []>} : vector<8x32xf32>, vector<32x32xf32>, vector<8x32xf32> -> vector<8x32xf32>
    %c0_10 = arith.constant 0 : index
    %c0_11 = arith.constant 0 : index
    %c0_12 = arith.constant 0 : index
    %8 = vector.load %arg3[%c0_10, %c0_11, %c0_12] : memref<1x8x32xf32, #tpu.memory_space<vmem>>, vector<1x8x32xf32>
    %9 = vector.shape_cast %8 : vector<1x8x32xf32> to vector<8x32xf32>
    %c0_13 = arith.constant 0 : index
    %c0_14 = arith.constant 0 : index
    %10 = vector.load %arg6[%c0_13, %c0_14] : memref<32x32xf32, #tpu.memory_space<vmem>>, vector<32x32xf32>
    %cst_15 = arith.constant dense<0.000000e+00> : vector<8x32xf32>
    %11 = tpu.matmul %9, %10, %cst_15 {dimension_numbers = #tpu.dot_dimension_numbers<[1], [0], [0], [1], [0, 0, 1, 1], [], []>} : vector<8x32xf32>, vector<32x32xf32>, vector<8x32xf32> -> vector<8x32xf32>
    %cst_16 = arith.constant 0.353553385 : f32
    %12 = vector.broadcast %cst_16 : f32 to vector<8x32xf32>
    %13 = arith.mulf %3, %12 : vector<8x32xf32>
    %cst_17 = arith.constant 0.000000e+00 : f32
    %14 = vector.broadcast %cst_17 : f32 to vector<8x32xf32>
    %15 = vector.extract_strided_slice %13 {offsets = [0, 0], sizes = [8, 8], strides = [1, 1]} : vector<8x32xf32> to vector<8x8xf32>
    %16 = vector.extract_strided_slice %7 {offsets = [0, 0], sizes = [8, 8], strides = [1, 1]} : vector<8x32xf32> to vector<8x8xf32>
    %17 = vector.extract_strided_slice %11 {offsets = [0, 0], sizes = [8, 8], strides = [1, 1]} : vector<8x32xf32> to vector<8x8xf32>
    %cst_18 = arith.constant dense<0.000000e+00> : vector<8x8xf32>
    %18 = tpu.matmul %15, %16, %cst_18 {dimension_numbers = #tpu.dot_dimension_numbers<[1], [1], [0], [0], [0, 0, 1, 0], [], []>} : vector<8x8xf32>, vector<8x8xf32>, vector<8x8xf32> -> vector<8x8xf32>
    %cst_19 = arith.constant dense<0xFF800000> : vector<8xf32>
    %19 = vector.multi_reduction <maximumf>, %18, %cst_19 [1] : vector<8x8xf32> to vector<8xf32>
    %20 = vector.shape_cast %19 : vector<8xf32> to vector<8x1xf32>
    %21 = vector.broadcast %20 : vector<8x1xf32> to vector<8x8xf32>
    %22 = arith.subf %18, %21 : vector<8x8xf32>
    %23 = math.exp %22 : vector<8x8xf32>
    %cst_20 = arith.constant dense<0.000000e+00> : vector<8xf32>
    %24 = vector.multi_reduction <add>, %23, %cst_20 [1] : vector<8x8xf32> to vector<8xf32>
    %25 = vector.shape_cast %24 : vector<8xf32> to vector<8x1xf32>
    %26 = tpu.reciprocal %25 : vector<8x1xf32> -> vector<8x1xf32>
    %27 = vector.broadcast %26 : vector<8x1xf32> to vector<8x8xf32>
    %28 = arith.mulf %23, %27 : vector<8x8xf32>
    %cst_21 = arith.constant dense<0.000000e+00> : vector<8x8xf32>
    %29 = tpu.matmul %28, %17, %cst_21 {dimension_numbers = #tpu.dot_dimension_numbers<[1], [0], [0], [1], [0, 0, 1, 1], [], []>} : vector<8x8xf32>, vector<8x8xf32>, vector<8x8xf32> -> vector<8x8xf32>
    %c0_22 = arith.constant 0 : index
    %c0_23 = arith.constant 0 : index
    %30 = vector.load %arg7[%c0_22, %c0_23] : memref<32x32xf32, #tpu.memory_space<vmem>>, vector<8x32xf32>
    %cst_24 = arith.constant dense<0.000000e+00> : vector<8x32xf32>
    %31 = tpu.matmul %29, %30, %cst_24 {dimension_numbers = #tpu.dot_dimension_numbers<[1], [0], [0], [1], [0, 0, 1, 1], [], []>} : vector<8x8xf32>, vector<8x32xf32>, vector<8x32xf32> -> vector<8x32xf32>
    %32 = arith.addf %14, %31 : vector<8x32xf32>
    %33 = vector.extract_strided_slice %13 {offsets = [0, 8], sizes = [8, 8], strides = [1, 1]} : vector<8x32xf32> to vector<8x8xf32>
    %34 = vector.extract_strided_slice %7 {offsets = [0, 8], sizes = [8, 8], strides = [1, 1]} : vector<8x32xf32> to vector<8x8xf32>
    %35 = vector.extract_strided_slice %11 {offsets = [0, 8], sizes = [8, 8], strides = [1, 1]} : vector<8x32xf32> to vector<8x8xf32>
    %cst_25 = arith.constant dense<0.000000e+00> : vector<8x8xf32>
    %36 = tpu.matmul %33, %34, %cst_25 {dimension_numbers = #tpu.dot_dimension_numbers<[1], [1], [0], [0], [0, 0, 1, 0], [], []>} : vector<8x8xf32>, vector<8x8xf32>, vector<8x8xf32> -> vector<8x8xf32>
    %cst_26 = arith.constant dense<0xFF800000> : vector<8xf32>
    %37 = vector.multi_reduction <maximumf>, %36, %cst_26 [1] : vector<8x8xf32> to vector<8xf32>
    %38 = vector.shape_cast %37 : vector<8xf32> to vector<8x1xf32>
    %39 = vector.broadcast %38 : vector<8x1xf32> to vector<8x8xf32>
    %40 = arith.subf %36, %39 : vector<8x8xf32>
    %41 = math.exp %40 : vector<8x8xf32>
    %cst_27 = arith.constant dense<0.000000e+00> : vector<8xf32>
    %42 = vector.multi_reduction <add>, %41, %cst_27 [1] : vector<8x8xf32> to vector<8xf32>
    %43 = vector.shape_cast %42 : vector<8xf32> to vector<8x1xf32>
    %44 = tpu.reciprocal %43 : vector<8x1xf32> -> vector<8x1xf32>
    %45 = vector.broadcast %44 : vector<8x1xf32> to vector<8x8xf32>
    %46 = arith.mulf %41, %45 : vector<8x8xf32>
    %cst_28 = arith.constant dense<0.000000e+00> : vector<8x8xf32>
    %47 = tpu.matmul %46, %35, %cst_28 {dimension_numbers = #tpu.dot_dimension_numbers<[1], [0], [0], [1], [0, 0, 1, 1], [], []>} : vector<8x8xf32>, vector<8x8xf32>, vector<8x8xf32> -> vector<8x8xf32>
    %c8 = arith.constant 8 : index
    %c0_29 = arith.constant 0 : index
    %48 = vector.load %arg7[%c8, %c0_29] : memref<32x32xf32, #tpu.memory_space<vmem>>, vector<8x32xf32>
    %cst_30 = arith.constant dense<0.000000e+00> : vector<8x32xf32>
    %49 = tpu.matmul %47, %48, %cst_30 {dimension_numbers = #tpu.dot_dimension_numbers<[1], [0], [0], [1], [0, 0, 1, 1], [], []>} : vector<8x8xf32>, vector<8x32xf32>, vector<8x32xf32> -> vector<8x32xf32>
    %50 = arith.addf %32, %49 : vector<8x32xf32>
    %51 = vector.extract_strided_slice %13 {offsets = [0, 16], sizes = [8, 8], strides = [1, 1]} : vector<8x32xf32> to vector<8x8xf32>
    %52 = vector.extract_strided_slice %7 {offsets = [0, 16], sizes = [8, 8], strides = [1, 1]} : vector<8x32xf32> to vector<8x8xf32>
    %53 = vector.extract_strided_slice %11 {offsets = [0, 16], sizes = [8, 8], strides = [1, 1]} : vector<8x32xf32> to vector<8x8xf32>
    %cst_31 = arith.constant dense<0.000000e+00> : vector<8x8xf32>
    %54 = tpu.matmul %51, %52, %cst_31 {dimension_numbers = #tpu.dot_dimension_numbers<[1], [1], [0], [0], [0, 0, 1, 0], [], []>} : vector<8x8xf32>, vector<8x8xf32>, vector<8x8xf32> -> vector<8x8xf32>
    %cst_32 = arith.constant dense<0xFF800000> : vector<8xf32>
    %55 = vector.multi_reduction <maximumf>, %54, %cst_32 [1] : vector<8x8xf32> to vector<8xf32>
    %56 = vector.shape_cast %55 : vector<8xf32> to vector<8x1xf32>
    %57 = vector.broadcast %56 : vector<8x1xf32> to vector<8x8xf32>
    %58 = arith.subf %54, %57 : vector<8x8xf32>
    %59 = math.exp %58 : vector<8x8xf32>
    %cst_33 = arith.constant dense<0.000000e+00> : vector<8xf32>
    %60 = vector.multi_reduction <add>, %59, %cst_33 [1] : vector<8x8xf32> to vector<8xf32>
    %61 = vector.shape_cast %60 : vector<8xf32> to vector<8x1xf32>
    %62 = tpu.reciprocal %61 : vector<8x1xf32> -> vector<8x1xf32>
    %63 = vector.broadcast %62 : vector<8x1xf32> to vector<8x8xf32>
    %64 = arith.mulf %59, %63 : vector<8x8xf32>
    %cst_34 = arith.constant dense<0.000000e+00> : vector<8x8xf32>
    %65 = tpu.matmul %64, %53, %cst_34 {dimension_numbers = #tpu.dot_dimension_numbers<[1], [0], [0], [1], [0, 0, 1, 1], [], []>} : vector<8x8xf32>, vector<8x8xf32>, vector<8x8xf32> -> vector<8x8xf32>
    %c16 = arith.constant 16 : index
    %c0_35 = arith.constant 0 : index
    %66 = vector.load %arg7[%c16, %c0_35] : memref<32x32xf32, #tpu.memory_space<vmem>>, vector<8x32xf32>
    %cst_36 = arith.constant dense<0.000000e+00> : vector<8x32xf32>
    %67 = tpu.matmul %65, %66, %cst_36 {dimension_numbers = #tpu.dot_dimension_numbers<[1], [0], [0], [1], [0, 0, 1, 1], [], []>} : vector<8x8xf32>, vector<8x32xf32>, vector<8x32xf32> -> vector<8x32xf32>
    %68 = arith.addf %50, %67 : vector<8x32xf32>
    %69 = vector.extract_strided_slice %13 {offsets = [0, 24], sizes = [8, 8], strides = [1, 1]} : vector<8x32xf32> to vector<8x8xf32>
    %70 = vector.extract_strided_slice %7 {offsets = [0, 24], sizes = [8, 8], strides = [1, 1]} : vector<8x32xf32> to vector<8x8xf32>
    %71 = vector.extract_strided_slice %11 {offsets = [0, 24], sizes = [8, 8], strides = [1, 1]} : vector<8x32xf32> to vector<8x8xf32>
    %cst_37 = arith.constant dense<0.000000e+00> : vector<8x8xf32>
    %72 = tpu.matmul %69, %70, %cst_37 {dimension_numbers = #tpu.dot_dimension_numbers<[1], [1], [0], [0], [0, 0, 1, 0], [], []>} : vector<8x8xf32>, vector<8x8xf32>, vector<8x8xf32> -> vector<8x8xf32>
    %cst_38 = arith.constant dense<0xFF800000> : vector<8xf32>
    %73 = vector.multi_reduction <maximumf>, %72, %cst_38 [1] : vector<8x8xf32> to vector<8xf32>
    %74 = vector.shape_cast %73 : vector<8xf32> to vector<8x1xf32>
    %75 = vector.broadcast %74 : vector<8x1xf32> to vector<8x8xf32>
    %76 = arith.subf %72, %75 : vector<8x8xf32>
    %77 = math.exp %76 : vector<8x8xf32>
    %cst_39 = arith.constant dense<0.000000e+00> : vector<8xf32>
    %78 = vector.multi_reduction <add>, %77, %cst_39 [1] : vector<8x8xf32> to vector<8xf32>
    %79 = vector.shape_cast %78 : vector<8xf32> to vector<8x1xf32>
    %80 = tpu.reciprocal %79 : vector<8x1xf32> -> vector<8x1xf32>
    %81 = vector.broadcast %80 : vector<8x1xf32> to vector<8x8xf32>
    %82 = arith.mulf %77, %81 : vector<8x8xf32>
    %cst_40 = arith.constant dense<0.000000e+00> : vector<8x8xf32>
    %83 = tpu.matmul %82, %71, %cst_40 {dimension_numbers = #tpu.dot_dimension_numbers<[1], [0], [0], [1], [0, 0, 1, 1], [], []>} : vector<8x8xf32>, vector<8x8xf32>, vector<8x8xf32> -> vector<8x8xf32>
    %c24 = arith.constant 24 : index
    %c0_41 = arith.constant 0 : index
    %84 = vector.load %arg7[%c24, %c0_41] : memref<32x32xf32, #tpu.memory_space<vmem>>, vector<8x32xf32>
    %cst_42 = arith.constant dense<0.000000e+00> : vector<8x32xf32>
    %85 = tpu.matmul %83, %84, %cst_42 {dimension_numbers = #tpu.dot_dimension_numbers<[1], [0], [0], [1], [0, 0, 1, 1], [], []>} : vector<8x8xf32>, vector<8x32xf32>, vector<8x32xf32> -> vector<8x32xf32>
    %86 = arith.addf %68, %85 : vector<8x32xf32>
    %c0_43 = arith.constant 0 : index
    %c0_44 = arith.constant 0 : index
    %87 = vector.load %arg8[%c0_43, %c0_44] : memref<1x32xf32, #tpu.memory_space<vmem>>, vector<1x32xf32>
    %88 = vector.broadcast %87 : vector<1x32xf32> to vector<8x32xf32>
    %89 = arith.addf %86, %88 : vector<8x32xf32>
    %c0_45 = arith.constant 0 : index
    %c0_46 = arith.constant 0 : index
    %c0_47 = arith.constant 0 : index
    %90 = vector.load %arg9[%c0_45, %c0_46, %c0_47] : memref<1x8x32xf32, #tpu.memory_space<vmem>>, vector<1x8x32xf32>
    %91 = vector.shape_cast %90 : vector<1x8x32xf32> to vector<8x32xf32>
    %92 = vector.shape_cast %89 : vector<8x32xf32> to vector<1x8x32xf32>
    tpu.vector_store %arg9[%c0_45, %c0_46, %c0_47], %92 {strides = array<i32>} : memref<1x8x32xf32, #tpu.memory_space<vmem>>, vector<1x8x32xf32>,
    return
  }
  func.func @transform_0(%arg0: i32) -> (i32, i32, i32) {
    %c0_i32 = arith.constant 0 : i32
    %c0_i32_0 = arith.constant 0 : i32
    %c0_i32_1 = arith.constant 0 : i32
    return %arg0, %c0_i32, %c0_i32_0 : i32, i32, i32
  }
  func.func @transform_1(%arg0: i32) -> (i32, i32, i32) {
    %c0_i32 = arith.constant 0 : i32
    %c0_i32_0 = arith.constant 0 : i32
    %c0_i32_1 = arith.constant 0 : i32
    return %arg0, %c0_i32, %c0_i32_0 : i32, i32, i32
  }
  func.func @transform_2(%arg0: i32) -> (i32, i32, i32) {
    %c0_i32 = arith.constant 0 : i32
    %c0_i32_0 = arith.constant 0 : i32
    %c0_i32_1 = arith.constant 0 : i32
    return %arg0, %c0_i32, %c0_i32_0 : i32, i32, i32
  }
  func.func @transform_3(%arg0: i32) -> (i32, i32) {
    %c0_i32 = arith.constant 0 : i32
    %c0_i32_0 = arith.constant 0 : i32
    %c0_i32_1 = arith.constant 0 : i32
    return %c0_i32, %c0_i32_0 : i32, i32
  }
  func.func @transform_4(%arg0: i32) -> (i32, i32) {
    %c0_i32 = arith.constant 0 : i32
    %c0_i32_0 = arith.constant 0 : i32
    %c0_i32_1 = arith.constant 0 : i32
    return %c0_i32, %c0_i32_0 : i32, i32
  }
  func.func @transform_5(%arg0: i32) -> (i32, i32) {
    %c0_i32 = arith.constant 0 : i32
    %c0_i32_0 = arith.constant 0 : i32
    %c0_i32_1 = arith.constant 0 : i32
    return %c0_i32, %c0_i32_0 : i32, i32
  }
  func.func @transform_6(%arg0: i32) -> (i32, i32) {
    %c0_i32 = arith.constant 0 : i32
    %c0_i32_0 = arith.constant 0 : i32
    %c0_i32_1 = arith.constant 0 : i32
    return %c0_i32, %c0_i32_0 : i32, i32
  }
  func.func @transform_7(%arg0: i32) -> (i32, i32) {
    %c0_i32 = arith.constant 0 : i32
    %c0_i32_0 = arith.constant 0 : i32
    %c0_i32_1 = arith.constant 0 : i32
    return %c0_i32, %c0_i32_0 : i32, i32
  }
  func.func @transform_8(%arg0: i32) -> (i32, i32, i32) {
    %c0_i32 = arith.constant 0 : i32
    %c0_i32_0 = arith.constant 0 : i32
    %c0_i32_1 = arith.constant 0 : i32
    return %arg0, %c0_i32, %c0_i32_0 : i32, i32, i32
  }
}

</mosaic_0001>

<llo_original>
// kernel: multi_headed_attention.1
$region0: #{multi_headed_attention.1}
  #allocation0 [shape = 'u32[]', space=smem, size = 0x4, offset = 0x4, fixed_abs, tag = 'smem constant byte address 0x4 - core index']
  #allocation1 [shape = 'u32[144,128]{1,0:T(1,128)}', space=vmem, size = 0x12000, scoped, tag = 'internal scratch']
  %s0 = inlined_call_operand.vmem [shape: f32[2,8,32], index: 0, kind: input, shape index: {}]
  %s1 = inlined_call_operand.hbm [shape: f32[2,8,32], index: 1, kind: input, shape index: {}]
  %s2 = inlined_call_operand.hbm [shape: f32[2,8,32], index: 2, kind: input, shape index: {}]
  %s3 = inlined_call_operand.hbm [shape: f32[32,32], index: 3, kind: input, shape index: {}]
  %s4 = inlined_call_operand.hbm [shape: f32[32,32], index: 4, kind: input, shape index: {}]
  %s5 = inlined_call_operand.hbm [shape: f32[32,32], index: 5, kind: input, shape index: {}]
  %s6 = inlined_call_operand.hbm [shape: f32[32,32], index: 6, kind: input, shape index: {}]
  %s7 = inlined_call_operand.vmem [shape: f32[1,32], index: 7, kind: input, shape index: {}]
  %s8 = inlined_call_operand.hbm [shape: f32[2,8,32], index: 8, kind: output, shape index: {}]
  %s9 = sld [smem:[#allocation0]]
  $region89: #{multi_headed_attention.1} parent=0
    _
  %s11 = ssub.s32 1, %s9
  %s12 = scalar_select 0, %s11, %s9
  $region1: #{multi_headed_attention.1} parent=0
    #allocation2 [shape = 'u8[8192]{0}', space=vmem, size = 0x2000, scoped, tag = 'input window, operand 1']
    #allocation3 [shape = 's32[2]{0}', space=sflag, size = 0x8, scoped, tag = 'scoped memory for multi_headed_attention.1']
    #allocation4 [shape = 's32[2]{0}', space=sflag, size = 0x8, scoped, tag = 'scoped memory for multi_headed_attention.1']
    #allocation5 [shape = 'u8[8192]{0}', space=vmem, size = 0x2000, scoped, tag = 'input window, operand 2']
    #allocation6 [shape = 's32[2]{0}', space=sflag, size = 0x8, scoped, tag = 'scoped memory for multi_headed_attention.1']
    #allocation7 [shape = 'u8[16384]{0}', space=vmem, size = 0x4000, scoped, tag = 'input window, operand 3, single buffered']
    #allocation8 [shape = 'u8[16384]{0}', space=vmem, size = 0x4000, scoped, tag = 'input window, operand 4, single buffered']
    #allocation9 [shape = 's32[1]{0}', space=sflag, size = 0x4, scoped, tag = 'scoped memory for multi_headed_attention.1']
    #allocation10 [shape = 'u8[16384]{0}', space=vmem, size = 0x4000, scoped, tag = 'input window, operand 5, single buffered']
    #allocation11 [shape = 'u8[16384]{0}', space=vmem, size = 0x4000, scoped, tag = 'input window, operand 6, single buffered']
    #allocation12 [shape = 's32[1]{0}', space=sflag, size = 0x4, scoped, tag = 'scoped memory for multi_headed_attention.1']
    #allocation13 [shape = 'u8[8192]{0}', space=vmem, size = 0x2000, scoped, tag = 'output window, operand 0']
    %13 = vsyncpa [#allocation3], 0
    %s14 = scalar_lea.sflag [#allocation3], 1
    %15 = vsyncpa %s14, 0
    %16 = vsyncpa [#allocation6], 0
    %s17 = scalar_lea.sflag [#allocation6], 1
    %18 = vsyncpa %s17, 0
    %19 = vsyncpa [#allocation9], 0
    %20 = vsyncpa [#allocation12], 0
    %21 = vsyncpa [#allocation4], 0
    %s22 = scalar_lea.sflag [#allocation4], 1
    %23 = vsyncpa %s22, 0
    loop: start=0, step=1, limit=4
    $region2: #{multi_headed_attention.1} parent=1 // loop_pre_header
      _
    $region3: #{multi_headed_attention.1} parent=1 // loop_header
      %s25 = sphi 0, %s29
      %p26 = scmp.ge.s32.totalorder %s25, 4
      %s35 = sphi 0, %s37
      %s38 = sphi 0, %s35
      %s39 = sphi 0, %s38
      %s55 = sphi 0, %s39
      %s61 = sphi 0, %s63
      %s64 = sphi 0, %s61
      %s65 = sphi 0, %s64
      %s81 = sphi 0, %s65
      %s87 = sphi 0, %s89
      %s90 = sphi 0, %s87
      %s91 = sphi 0, %s90
      %s107 = sphi 0, %s91
      %s111 = sphi 0, %s111
      %s113 = sphi 0, %s111
      %s114 = sphi 0, %s113
      %s128 = sphi 0, %s114
      %s132 = sphi 0, %s132
      %s134 = sphi 0, %s132
      %s135 = sphi 0, %s134
      %s149 = sphi 0, %s135
      %s153 = sphi 0, %s153
      %s155 = sphi 0, %s153
      %s156 = sphi 0, %s155
      %s170 = sphi 0, %s156
      %s174 = sphi 0, %s174
      %s176 = sphi 0, %s174
      %s177 = sphi 0, %s176
      %s191 = sphi 0, %s177
      %s195 = sphi 0, %s195
      %s197 = sphi 0, %s195
      %s198 = sphi 0, %s197
      %s212 = sphi 0, %s198
      %s218 = sphi 0, %s220
      %s221 = sphi 0, %s218
      %s222 = sphi 0, %s221
      %s238 = sphi 0, %s222
    $region4: #{multi_headed_attention.1} parent=1 // loop_header_branch
      %28 = sbr.rel (%p26) target = $region8
    $region5: #{multi_headed_attention.1} parent=1 // loop_body
      %s30 = ssub.s32 %s25, 1
      %s31 = ssub.s32 %s25, 2
      %s32 = sadd.s32 %s25, 1
      %s33 = ssub.s32 %s25, %s32
      %p34 = scmp.eq.s32.totalorder %s33, 0
      %s36 = sadd.s32 %s35, 1
      %s37 = scalar_select %p34, %s35, %s36
      %p40 = pneg %p34
      %p41 = scmp.eq.s32.totalorder %s25, 1
      %p42 = por %p40, %p41
      %p43 = scmp.ne.s32.totalorder %s35, %s38
      %p44 = scmp.eq.s32.totalorder %s25, 0
      %p45 = por %p43, %p44
      %p46 = scmp.ne.s32.totalorder %s35, %s38
      %p47 = scmp.eq.s32.totalorder %s30, 1
      %p48 = por %p46, %p47
      %p49 = scmp.ne.s32.totalorder %s38, %s39
      %p50 = scmp.eq.s32.totalorder %s30, 0
      %p51 = por %p49, %p50
      %p52 = scmp.ne.s32.totalorder %s38, %s39
      %p53 = scmp.eq.s32.totalorder %s31, 1
      %p54 = por %p52, %p53
      %p56 = scmp.ne.s32.totalorder %s39, %s55
      %p57 = scmp.eq.s32.totalorder %s31, 0
      %p58 = por %p56, %p57
      %s59 = ssub.s32 %s25, %s32
      %p60 = scmp.eq.s32.totalorder %s59, 0
      %s62 = sadd.s32 %s61, 1
      %s63 = scalar_select %p60, %s61, %s62
      %p66 = pneg %p60
      %p67 = scmp.eq.s32.totalorder %s25, 1
      %p68 = por %p66, %p67
      %p69 = scmp.ne.s32.totalorder %s61, %s64
      %p70 = scmp.eq.s32.totalorder %s25, 0
      %p71 = por %p69, %p70
      %p72 = scmp.ne.s32.totalorder %s61, %s64
      %p73 = scmp.eq.s32.totalorder %s30, 1
      %p74 = por %p72, %p73
      %p75 = scmp.ne.s32.totalorder %s64, %s65
      %p76 = scmp.eq.s32.totalorder %s30, 0
      %p77 = por %p75, %p76
      %p78 = scmp.ne.s32.totalorder %s64, %s65
      %p79 = scmp.eq.s32.totalorder %s31, 1
      %p80 = por %p78, %p79
      %p82 = scmp.ne.s32.totalorder %s65, %s81
      %p83 = scmp.eq.s32.totalorder %s31, 0
      %p84 = por %p82, %p83
      %s85 = ssub.s32 %s25, %s32
      %p86 = scmp.eq.s32.totalorder %s85, 0
      %s88 = sadd.s32 %s87, 1
      %s89 = scalar_select %p86, %s87, %s88
      %p92 = pneg %p86
      %p93 = scmp.eq.s32.totalorder %s25, 1
      %p94 = por %p92, %p93
      %p95 = scmp.ne.s32.totalorder %s87, %s90
      %p96 = scmp.eq.s32.totalorder %s25, 0
      %p97 = por %p95, %p96
      %p98 = scmp.ne.s32.totalorder %s87, %s90
      %p99 = scmp.eq.s32.totalorder %s30, 1
      %p100 = por %p98, %p99
      %p101 = scmp.ne.s32.totalorder %s90, %s91
      %p102 = scmp.eq.s32.totalorder %s30, 0
      %p103 = por %p101, %p102
      %p104 = scmp.ne.s32.totalorder %s90, %s91
      %p105 = scmp.eq.s32.totalorder %s31, 1
      %p106 = por %p104, %p105
      %p108 = scmp.ne.s32.totalorder %s91, %s107
      %p109 = scmp.eq.s32.totalorder %s31, 0
      %p110 = por %p108, %p109
      %s112 = sadd.s32 %s111, 1
      %p115 = scmp.eq.s32.totalorder %s25, 1
      %p116 = scmp.ne.s32.totalorder %s111, %s113
      %p117 = scmp.eq.s32.totalorder %s25, 0
      %p118 = por %p116, %p117
      %p119 = scmp.ne.s32.totalorder %s111, %s113
      %p120 = scmp.eq.s32.totalorder %s30, 1
      %p121 = por %p119, %p120
      %p122 = scmp.ne.s32.totalorder %s113, %s114
      %p123 = scmp.eq.s32.totalorder %s30, 0
      %p124 = por %p122, %p123
      %p125 = scmp.ne.s32.totalorder %s113, %s114
      %p126 = scmp.eq.s32.totalorder %s31, 1
      %p127 = por %p125, %p126
      %p129 = scmp.ne.s32.totalorder %s114, %s128
      %p130 = scmp.eq.s32.totalorder %s31, 0
      %p131 = por %p129, %p130
      %s133 = sadd.s32 %s132, 1
      %p136 = scmp.eq.s32.totalorder %s25, 1
      %p137 = scmp.ne.s32.totalorder %s132, %s134
      %p138 = scmp.eq.s32.totalorder %s25, 0
      %p139 = por %p137, %p138
      %p140 = scmp.ne.s32.totalorder %s132, %s134
      %p141 = scmp.eq.s32.totalorder %s30, 1
      %p142 = por %p140, %p141
      %p143 = scmp.ne.s32.totalorder %s134, %s135
      %p144 = scmp.eq.s32.totalorder %s30, 0
      %p145 = por %p143, %p144
      %p146 = scmp.ne.s32.totalorder %s134, %s135
      %p147 = scmp.eq.s32.totalorder %s31, 1
      %p148 = por %p146, %p147
      %p150 = scmp.ne.s32.totalorder %s135, %s149
      %p151 = scmp.eq.s32.totalorder %s31, 0
      %p152 = por %p150, %p151
      %s154 = sadd.s32 %s153, 1
      %p157 = scmp.eq.s32.totalorder %s25, 1
      %p158 = scmp.ne.s32.totalorder %s153, %s155
      %p159 = scmp.eq.s32.totalorder %s25, 0
      %p160 = por %p158, %p159
      %p161 = scmp.ne.s32.totalorder %s153, %s155
      %p162 = scmp.eq.s32.totalorder %s30, 1
      %p163 = por %p161, %p162
      %p164 = scmp.ne.s32.totalorder %s155, %s156
      %p165 = scmp.eq.s32.totalorder %s30, 0
      %p166 = por %p164, %p165
      %p167 = scmp.ne.s32.totalorder %s155, %s156
      %p168 = scmp.eq.s32.totalorder %s31, 1
      %p169 = por %p167, %p168
      %p171 = scmp.ne.s32.totalorder %s156, %s170
      %p172 = scmp.eq.s32.totalorder %s31, 0
      %p173 = por %p171, %p172
      %s175 = sadd.s32 %s174, 1
      %p178 = scmp.eq.s32.totalorder %s25, 1
      %p179 = scmp.ne.s32.totalorder %s174, %s176
      %p180 = scmp.eq.s32.totalorder %s25, 0
      %p181 = por %p179, %p180
      %p182 = scmp.ne.s32.totalorder %s174, %s176
      %p183 = scmp.eq.s32.totalorder %s30, 1
      %p184 = por %p182, %p183
      %p185 = scmp.ne.s32.totalorder %s176, %s177
      %p186 = scmp.eq.s32.totalorder %s30, 0
      %p187 = por %p185, %p186
      %p188 = scmp.ne.s32.totalorder %s176, %s177
      %p189 = scmp.eq.s32.totalorder %s31, 1
      %p190 = por %p188, %p189
      %p192 = scmp.ne.s32.totalorder %s177, %s191
      %p193 = scmp.eq.s32.totalorder %s31, 0
      %p194 = por %p192, %p193
      %s196 = sadd.s32 %s195, 1
      %p199 = scmp.eq.s32.totalorder %s25, 1
      %p200 = scmp.ne.s32.totalorder %s195, %s197
      %p201 = scmp.eq.s32.totalorder %s25, 0
      %p202 = por %p200, %p201
      %p203 = scmp.ne.s32.totalorder %s195, %s197
      %p204 = scmp.eq.s32.totalorder %s30, 1
      %p205 = por %p203, %p204
      %p206 = scmp.ne.s32.totalorder %s197, %s198
      %p207 = scmp.eq.s32.totalorder %s30, 0
      %p208 = por %p206, %p207
      %p209 = scmp.ne.s32.totalorder %s197, %s198
      %p210 = scmp.eq.s32.totalorder %s31, 1
      %p211 = por %p209, %p210
      %p213 = scmp.ne.s32.totalorder %s198, %s212
      %p214 = scmp.eq.s32.totalorder %s31, 0
      %p215 = por %p213, %p214
      %s216 = ssub.s32 %s25, %s32
      %p217 = scmp.eq.s32.totalorder %s216, 0
      %s219 = sadd.s32 %s218, 1
      %s220 = scalar_select %p217, %s218, %s219
      %p223 = pneg %p217
      %p224 = scmp.eq.s32.totalorder %s25, 1
      %p225 = por %p223, %p224
      %p226 = scmp.ne.s32.totalorder %s218, %s221
      %p227 = scmp.eq.s32.totalorder %s25, 0
      %p228 = por %p226, %p227
      %p229 = scmp.ne.s32.totalorder %s218, %s221
      %p230 = scmp.eq.s32.totalorder %s30, 1
      %p231 = por %p229, %p230
      %p232 = scmp.ne.s32.totalorder %s221, %s222
      %p233 = scmp.eq.s32.totalorder %s30, 0
      %p234 = por %p232, %p233
      %p235 = scmp.ne.s32.totalorder %s221, %s222
      %p236 = scmp.eq.s32.totalorder %s31, 1
      %p237 = por %p235, %p236
      %p239 = scmp.ne.s32.totalorder %s222, %s238
      %p240 = scmp.eq.s32.totalorder %s31, 0
      %p241 = por %p239, %p240
      %p242 = scmp.le.s32.totalorder 1, %s25
      %p243 = scmp.lt.s32.totalorder %s25, 3
      %p244 = pnand %p242, %p243
      %p245 = pneg %p244
      // Predicated region
      $region9: #{multi_headed_attention.1} parent=5 // pred_check
        _
      $region10: #{multi_headed_attention.1} parent=5 // pred_check_branch
        %247 = sbr.rel (%p244) target = $region12
      $region11: #{multi_headed_attention.1} parent=5 // pred_region
        %s248 = ssub.s32 %s25, 1
        // Predicated region
        $region13: #{multi_headed_attention.1} parent=11 // pred_check
          %p249 = pneg %p124
        $region14: #{multi_headed_attention.1} parent=11 // pred_check_branch
          %251 = sbr.rel (%p249) target = $region16
        $region15: #{multi_headed_attention.1} parent=11 // pred_region
          %s253 = ssub.s32 512, 512
          %254 = vsyncadd [#allocation6], %s253
          %s255 = sshll.u32 [#allocation7], 4
          %s256 = int_to_ptr.vmem [resolvable:$true] %s255
          %261 = dma.hbm_to_vmem [thread:$0]  %s3, 512, %s256, [#allocation6], 128, 128, 8
        $region16: #{multi_headed_attention.1} parent=11 // pred_fallthru
          _
        // Predicated region
        $region17: #{multi_headed_attention.1} parent=11 // pred_check
          %p262 = pneg %p145
        $region18: #{multi_headed_attention.1} parent=11 // pred_check_branch
          %264 = sbr.rel (%p262) target = $region20
        $region19: #{multi_headed_attention.1} parent=11 // pred_region
          %s266 = ssub.s32 512, 512
          %267 = vsyncadd [#allocation9], %s266
          %s268 = sshll.u32 [#allocation8], 4
          %s269 = int_to_ptr.vmem [resolvable:$true] %s268
          %274 = dma.hbm_to_vmem [thread:$0]  %s4, 512, %s269, [#allocation9], 128, 128, 8
        $region20: #{multi_headed_attention.1} parent=11 // pred_fallthru
          _
        // Predicated region
        $region21: #{multi_headed_attention.1} parent=11 // pred_check
          %p275 = pneg %p166
        $region22: #{multi_headed_attention.1} parent=11 // pred_check_branch
          %277 = sbr.rel (%p275) target = $region24
        $region23: #{multi_headed_attention.1} parent=11 // pred_region
          %s279 = ssub.s32 512, 512
          %280 = vsyncadd [#allocation9], %s279
          %s281 = sshll.u32 [#allocation10], 4
          %s282 = int_to_ptr.vmem [resolvable:$true] %s281
          %287 = dma.hbm_to_vmem [thread:$0]  %s5, 512, %s282, [#allocation9], 128, 128, 8
        $region24: #{multi_headed_attention.1} parent=11 // pred_fallthru
          _
        // Predicated region
        $region25: #{multi_headed_attention.1} parent=11 // pred_check
          %p288 = pneg %p187
        $region26: #{multi_headed_attention.1} parent=11 // pred_check_branch
          %290 = sbr.rel (%p288) target = $region28
        $region27: #{multi_headed_attention.1} parent=11 // pred_region
          %s292 = ssub.s32 512, 512
          %293 = vsyncadd [#allocation12], %s292
          %s294 = sshll.u32 [#allocation11], 4
          %s295 = int_to_ptr.vmem [resolvable:$true] %s294
          %300 = dma.hbm_to_vmem [thread:$0]  %s6, 512, %s295, [#allocation12], 128, 128, 8
        $region28: #{multi_headed_attention.1} parent=11 // pred_fallthru
          _
        // Predicated region
        $region29: #{multi_headed_attention.1} parent=11 // pred_check
          %p301 = pneg %p208
        $region30: #{multi_headed_attention.1} parent=11 // pred_check_branch
          %303 = sbr.rel (%p301) target = $region32
        $region31: #{multi_headed_attention.1} parent=11 // pred_region
          _
        $region32: #{multi_headed_attention.1} parent=11 // pred_fallthru
          _
      $region12: #{multi_headed_attention.1} parent=5 // pred_fallthru
        _
      %p304 = scmp.lt.s32.totalorder %s25, 2
      // Predicated region
      $region33: #{multi_headed_attention.1} parent=5 // pred_check
        %p305 = pneg %p304
      $region34: #{multi_headed_attention.1} parent=5 // pred_check_branch
        %307 = sbr.rel (%p305) target = $region36
      $region35: #{multi_headed_attention.1} parent=5 // pred_region
        // Predicated region
        $region37: #{multi_headed_attention.1} parent=35 // pred_check
          %p308 = pneg %p45
        $region38: #{multi_headed_attention.1} parent=35 // pred_check_branch
          %310 = sbr.rel (%p308) target = $region40
        $region39: #{multi_headed_attention.1} parent=35 // pred_region
          %p311 = scmp.lt.s32.totalorder %s25, 1
          %s312 = scalar_select %p311, %s25, 1
          %s313 = smul.addr %s312, 8
          %s314 = scalar_lea.vmem %s0, %s313
        $region40: #{multi_headed_attention.1} parent=35 // pred_fallthru
          _
        // Predicated region
        $region41: #{multi_headed_attention.1} parent=35 // pred_check
          %p315 = pneg %p71
        $region42: #{multi_headed_attention.1} parent=35 // pred_check_branch
          %317 = sbr.rel (%p315) target = $region44
        $region43: #{multi_headed_attention.1} parent=35 // pred_region
          %s318 = sand.u32 %s61, 1
          %s319 = scalar_lea.sflag [#allocation3], %s318
          %s320 = sand.u32 %s61, 1
          %s321 = smul.addr %s320, 8
          %s322 = scalar_lea.vmem [#allocation2], %s321
          %s324 = ssub.s32 128, 128
          %325 = vsyncadd %s319, %s324
          %s326 = smul.addr %s25, 128
          %s327 = scalar_lea.hbm %s1, %s326
          %s329 = sshll.u32 %s322, 4
          %s330 = int_to_ptr.vmem [resolvable:$true] %s329
          %332 = dma.hbm_to_vmem [thread:$0]  %s327, 128, %s330, %s319
        $region44: #{multi_headed_attention.1} parent=35 // pred_fallthru
          _
        // Predicated region
        $region45: #{multi_headed_attention.1} parent=35 // pred_check
          %p333 = pneg %p97
        $region46: #{multi_headed_attention.1} parent=35 // pred_check_branch
          %335 = sbr.rel (%p333) target = $region48
        $region47: #{multi_headed_attention.1} parent=35 // pred_region
          %s336 = sand.u32 %s25, 1
          %s337 = scalar_lea.sflag [#allocation6], %s336
          %s338 = sand.u32 %s87, 1
          %s339 = smul.addr %s338, 8
          %s340 = scalar_lea.vmem [#allocation5], %s339
          %s342 = ssub.s32 128, 128
          %343 = vsyncadd %s337, %s342
          %s344 = smul.addr %s25, 128
          %s345 = scalar_lea.hbm %s2, %s344
          %s347 = sshll.u32 %s340, 4
          %s348 = int_to_ptr.vmem [resolvable:$true] %s347
          %350 = dma.hbm_to_vmem [thread:$0]  %s345, 128, %s348, %s337
        $region48: #{multi_headed_attention.1} parent=35 // pred_fallthru
          _
      $region36: #{multi_headed_attention.1} parent=5 // pred_fallthru
        _
      %p351 = scmp.le.s32.totalorder 1, %s25
      %p352 = scmp.lt.s32.totalorder %s25, 3
      %p353 = pnand %p351, %p352
      %p354 = pneg %p353
      // Predicated region
      $region49: #{multi_headed_attention.1} parent=5 // pred_check
        _
      $region50: #{multi_headed_attention.1} parent=5 // pred_check_branch
        %356 = sbr.rel (%p353) target = $region52
      $region51: #{multi_headed_attention.1} parent=5 // pred_region
        %s357 = ssub.s32 %s25, 1
        %s358 = sand.u32 %s64, 1
        %s359 = scalar_lea.sflag [#allocation3], %s358
        %s360 = sand.u32 %s64, 1
        %s361 = smul.addr %s360, 8
        %s362 = scalar_lea.vmem [#allocation2], %s361
        // Predicated region
        $region53: #{multi_headed_attention.1} parent=51 // pred_check
          %p363 = pneg %p77
        $region54: #{multi_headed_attention.1} parent=51 // pred_check_branch
          %365 = sbr.rel (%p363) target = $region56
        $region55: #{multi_headed_attention.1} parent=51 // pred_region
          %366 = dma.done %s359, 128
        $region56: #{multi_headed_attention.1} parent=51 // pred_fallthru
          _
        %s367 = sand.u32 %s30, 1
        %s368 = scalar_lea.sflag [#allocation6], %s367
        %s369 = sand.u32 %s90, 1
        %s370 = smul.addr %s369, 8
        %s371 = scalar_lea.vmem [#allocation5], %s370
        // Predicated region
        $region57: #{multi_headed_attention.1} parent=51 // pred_check
          %p372 = pneg %p103
        $region58: #{multi_headed_attention.1} parent=51 // pred_check_branch
          %374 = sbr.rel (%p372) target = $region60
        $region59: #{multi_headed_attention.1} parent=51 // pred_region
          %375 = dma.done %s368, 128
        $region60: #{multi_headed_attention.1} parent=51 // pred_fallthru
          _
        // Predicated region
        $region61: #{multi_headed_attention.1} parent=51 // pred_check
          %p376 = pneg %p124
        $region62: #{multi_headed_attention.1} parent=51 // pred_check_branch
          %378 = sbr.rel (%p376) target = $region64
        $region63: #{multi_headed_attention.1} parent=51 // pred_region
          %379 = dma.done [#allocation6], 512
        $region64: #{multi_headed_attention.1} parent=51 // pred_fallthru
          _
        // Predicated region
        $region65: #{multi_headed_attention.1} parent=51 // pred_check
          %p380 = pneg %p145
        $region66: #{multi_headed_attention.1} parent=51 // pred_check_branch
          %382 = sbr.rel (%p380) target = $region68
        $region67: #{multi_headed_attention.1} parent=51 // pred_region
          %383 = dma.done [#allocation9], 512
        $region68: #{multi_headed_attention.1} parent=51 // pred_fallthru
          _
        // Predicated region
        $region69: #{multi_headed_attention.1} parent=51 // pred_check
          %p384 = pneg %p166
        $region70: #{multi_headed_attention.1} parent=51 // pred_check_branch
          %386 = sbr.rel (%p384) target = $region72
        $region71: #{multi_headed_attention.1} parent=51 // pred_region
          %387 = dma.done [#allocation9], 512
        $region72: #{multi_headed_attention.1} parent=51 // pred_fallthru
          _
        // Predicated region
        $region73: #{multi_headed_attention.1} parent=51 // pred_check
          %p388 = pneg %p187
        $region74: #{multi_headed_attention.1} parent=51 // pred_check_branch
          %390 = sbr.rel (%p388) target = $region76
        $region75: #{multi_headed_attention.1} parent=51 // pred_region
          %391 = dma.done [#allocation12], 512
        $region76: #{multi_headed_attention.1} parent=51 // pred_fallthru
          _
        %p392 = scmp.lt.s32.totalorder %s30, 1
        %s393 = scalar_select %p392, %s30, 1
        %s394 = smul.addr %s393, 8
        %s395 = scalar_lea.vmem %s0, %s394
        %p396 = pneg %p51
        %p397 = pneg %p48
        %s398 = sand.u32 %s64, 1
        %s399 = scalar_lea.sflag [#allocation3], %s398
        %s400 = sand.u32 %s64, 1
        %s401 = smul.addr %s400, 8
        %s402 = scalar_lea.vmem [#allocation2], %s401
        %p403 = pneg %p77
        %p404 = pneg %p74
        %s405 = sand.u32 %s30, 1
        %s406 = scalar_lea.sflag [#allocation6], %s405
        %s407 = sand.u32 %s90, 1
        %s408 = smul.addr %s407, 8
        %s409 = scalar_lea.vmem [#allocation5], %s408
        %p410 = pneg %p103
        %p411 = pneg %p100
        %p412 = pneg %p124
        %p413 = pneg %p121
        %p414 = pneg %p145
        %p415 = pneg %p142
        %p416 = pneg %p166
        %p417 = pneg %p163
        %p418 = pneg %p187
        %p419 = pneg %p184
        %p420 = pneg %p208
        %p421 = pneg %p205
        %p422 = pneg %p234
        %p423 = pneg %p231
        %s424 = sand.u32 %s221, 1
        %s425 = scalar_lea.sflag [#allocation4], %s424
        %s426 = sand.u32 %s221, 1
        %s427 = smul.addr %s426, 8
        %s428 = scalar_lea.vmem [#allocation13], %s427
        %p429 = scmp.lt.s32.totalorder %s30, 1
        %s430 = scalar_select %p429, %s30, 1
        %s431 = smul.addr %s430, 8
        %s432 = scalar_lea.vmem %s0, %s431
        %v433 = vld [vmem:[%s432] sm:$0xff]
        %v434 = vld [vmem:[#allocation7] sm:$0xff]
        %v435 = vld [vmem:[#allocation7 + $0x8] sm:$0xff]
        %v436 = vld [vmem:[#allocation7 + $0x10] sm:$0xff]
        %v437 = vld [vmem:[#allocation7 + $0x18] sm:$0xff]
        %vm438 = vcmask 261120
        %v440 = vsel %vm438, %v433, 0
        %442 = vmatprep.subr.mxu0 0.0
        %443 = vmatpush1.msra.mxu0 %v434
        %444 = vmatprep.subr.mxu0 0.0
        %445 = vmatpush1.msra.mxu0 %v435
        %446 = vmatprep.subr.mxu0 0.0
        %447 = vmatpush1.msra.mxu0 %v436
        %448 = vmatprep.subr.mxu0 0.0
        %449 = vmatpush1.msra.mxu0 %v437
        %450 = vmatprep.subr.mxu0 0.0
        %451 = vmatpush1.msra.mxu0 0.0
        %452 = vmatprep.subr.mxu0 0.0
        %453 = vmatpush1.msra.mxu0 0.0
        %454 = vmatprep.subr.mxu0 0.0
        %455 = vmatpush1.msra.mxu0 0.0
        %456 = vmatprep.subr.mxu0 0.0
        %457 = vmatpush1.msra.mxu0 0.0
        %458 = vmatprep.subr.mxu0 0.0
        %459 = vmatpush1.msra.mxu0 0.0
        %460 = vmatprep.subr.mxu0 0.0
        %461 = vmatpush1.msra.mxu0 0.0
        %462 = vmatprep.subr.mxu0 0.0
        %463 = vmatpush1.msra.mxu0 0.0
        %464 = vmatprep.subr.mxu0 0.0
        %465 = vmatpush1.msra.mxu0 0.0
        %466 = vmatprep.subr.mxu0 0.0
        %467 = vmatpush1.msra.mxu0 0.0
        %468 = vmatprep.subr.mxu0 0.0
        %469 = vmatpush1.msra.mxu0 0.0
        %470 = vmatprep.subr.mxu0 0.0
        %471 = vmatpush1.msra.mxu0 0.0
        %472 = vmatprep.subr.mxu0 0.0
        %473 = vmatpush1.msra.mxu0 0.0
        %474 = vmatprep.subr.mxu0 0.0
        %475 = vmatpush1.msra.mxu0 0.0
        %476 = vmatprep.subr.mxu0 0.0
        %477 = vmatpush1.msra.mxu0 0.0
        %478 = vmatprep.subr.mxu0 0.0
        %479 = vmatpush1.msra.mxu0 0.0
        %480 = vmatprep.subr.mxu0 0.0
        %481 = vmatpush1.msra.mxu0 0.0
        %482 = vmatprep.subr.mxu0 0.0
        %483 = vmatpush1.msra.mxu0 0.0
        %484 = vmatprep.subr.mxu0 0.0
        %485 = vmatpush1.msra.mxu0 0.0
        %486 = vmatprep.subr.mxu0 0.0
        %487 = vmatpush1.msra.mxu0 0.0
        %488 = vmatprep.subr.mxu0 0.0
        %489 = vmatpush1.msra.mxu0 0.0
        %490 = vmatprep.subr.mxu0 0.0
        %491 = vmatpush1.msra.mxu0 0.0
        %492 = vmatprep.subr.mxu0 0.0
        %493 = vmatpush1.msra.mxu0 0.0
        %494 = vmatprep.subr.mxu0 0.0
        %495 = vmatpush1.msra.mxu0 0.0
        %496 = vmatprep.subr.mxu0 0.0
        %497 = vmatpush1.msra.mxu0 0.0
        %498 = vmatprep.subr.mxu0 0.0
        %499 = vmatpush1.msra.mxu0 0.0
        %500 = vmatprep.subr.mxu0 0.0
        %501 = vmatpush1.msra.mxu0 0.0
        %502 = vmatprep.subr.mxu0 0.0
        %503 = vmatpush1.msra.mxu0 0.0
        %504 = vmatprep.subr.mxu0 0.0
        %505 = vmatpush1.msra.mxu0 0.0
        %506 = vmatprep.mubr.f32.mxu0 0.0
        %507 = vmatmul.mubr.f32.gmra.mrb[0].mxu0 %v440
        %v508 = vpop.f32.mrb[0].mxu0
        %v509 = vadd.f32 0.0, %v508
        %v510 = vpop.f32.mrb[0].mxu0
        %511 = vdwg.mxu0
        %v512 = vld [vmem:[%s362] sm:$0xff]
        %v513 = vld [vmem:[#allocation8] sm:$0xff]
        %v514 = vld [vmem:[#allocation8 + $0x8] sm:$0xff]
        %v515 = vld [vmem:[#allocation8 + $0x10] sm:$0xff]
        %v516 = vld [vmem:[#allocation8 + $0x18] sm:$0xff]
        %v518 = vsel %vm438, %v512, 0
        %520 = vmatprep.subr.mxu0 0.0
        %521 = vmatpush1.msra.mxu0 %v513
        %522 = vmatprep.subr.mxu0 0.0
        %523 = vmatpush1.msra.mxu0 %v514
        %524 = vmatprep.subr.mxu0 0.0
        %525 = vmatpush1.msra.mxu0 %v515
        %526 = vmatprep.subr.mxu0 0.0
        %527 = vmatpush1.msra.mxu0 %v516
        %528 = vmatprep.subr.mxu0 0.0
        %529 = vmatpush1.msra.mxu0 0.0
        %530 = vmatprep.subr.mxu0 0.0
        %531 = vmatpush1.msra.mxu0 0.0
        %532 = vmatprep.subr.mxu0 0.0
        %533 = vmatpush1.msra.mxu0 0.0
        %534 = vmatprep.subr.mxu0 0.0
        %535 = vmatpush1.msra.mxu0 0.0
        %536 = vmatprep.subr.mxu0 0.0
        %537 = vmatpush1.msra.mxu0 0.0
        %538 = vmatprep.subr.mxu0 0.0
        %539 = vmatpush1.msra.mxu0 0.0
        %540 = vmatprep.subr.mxu0 0.0
        %541 = vmatpush1.msra.mxu0 0.0
        %542 = vmatprep.subr.mxu0 0.0
        %543 = vmatpush1.msra.mxu0 0.0
        %544 = vmatprep.subr.mxu0 0.0
        %545 = vmatpush1.msra.mxu0 0.0
        %546 = vmatprep.subr.mxu0 0.0
        %547 = vmatpush1.msra.mxu0 0.0
        %548 = vmatprep.subr.mxu0 0.0
        %549 = vmatpush1.msra.mxu0 0.0
        %550 = vmatprep.subr.mxu0 0.0
        %551 = vmatpush1.msra.mxu0 0.0
        %552 = vmatprep.subr.mxu0 0.0
        %553 = vmatpush1.msra.mxu0 0.0
        %554 = vmatprep.subr.mxu0 0.0
        %555 = vmatpush1.msra.mxu0 0.0
        %556 = vmatprep.subr.mxu0 0.0
        %557 = vmatpush1.msra.mxu0 0.0
        %558 = vmatprep.subr.mxu0 0.0
        %559 = vmatpush1.msra.mxu0 0.0
        %560 = vmatprep.subr.mxu0 0.0
        %561 = vmatpush1.msra.mxu0 0.0
        %562 = vmatprep.subr.mxu0 0.0
        %563 = vmatpush1.msra.mxu0 0.0
        %564 = vmatprep.subr.mxu0 0.0
        %565 = vmatpush1.msra.mxu0 0.0
        %566 = vmatprep.subr.mxu0 0.0
        %567 = vmatpush1.msra.mxu0 0.0
        %568 = vmatprep.subr.mxu0 0.0
        %569 = vmatpush1.msra.mxu0 0.0
        %570 = vmatprep.subr.mxu0 0.0
        %571 = vmatpush1.msra.mxu0 0.0
        %572 = vmatprep.subr.mxu0 0.0
        %573 = vmatpush1.msra.mxu0 0.0
        %574 = vmatprep.subr.mxu0 0.0
        %575 = vmatpush1.msra.mxu0 0.0
        %576 = vmatprep.subr.mxu0 0.0
        %577 = vmatpush1.msra.mxu0 0.0
        %578 = vmatprep.subr.mxu0 0.0
        %579 = vmatpush1.msra.mxu0 0.0
        %580 = vmatprep.subr.mxu0 0.0
        %581 = vmatpush1.msra.mxu0 0.0
        %582 = vmatprep.subr.mxu0 0.0
        %583 = vmatpush1.msra.mxu0 0.0
        %584 = vmatprep.mubr.f32.mxu0 0.0
        %585 = vmatmul.mubr.f32.gmra.mrb[0].mxu0 %v518
        %v586 = vpop.f32.mrb[0].mxu0
        %v587 = vadd.f32 0.0, %v586
        %v588 = vpop.f32.mrb[0].mxu0
        %589 = vdwg.mxu0
        %v590 = vld [vmem:[%s371] sm:$0xff]
        %v591 = vld [vmem:[#allocation10] sm:$0xff]
        %v592 = vld [vmem:[#allocation10 + $0x8] sm:$0xff]
        %v593 = vld [vmem:[#allocation10 + $0x10] sm:$0xff]
        %v594 = vld [vmem:[#allocation10 + $0x18] sm:$0xff]
        %v596 = vsel %vm438, %v590, 0
        %598 = vmatprep.subr.mxu0 0.0
        %599 = vmatpush1.msra.mxu0 %v591
        %600 = vmatprep.subr.mxu0 0.0
        %601 = vmatpush1.msra.mxu0 %v592
        %602 = vmatprep.subr.mxu0 0.0
        %603 = vmatpush1.msra.mxu0 %v593
        %604 = vmatprep.subr.mxu0 0.0
        %605 = vmatpush1.msra.mxu0 %v594
        %606 = vmatprep.subr.mxu0 0.0
        %607 = vmatpush1.msra.mxu0 0.0
        %608 = vmatprep.subr.mxu0 0.0
        %609 = vmatpush1.msra.mxu0 0.0
        %610 = vmatprep.subr.mxu0 0.0
        %611 = vmatpush1.msra.mxu0 0.0
        %612 = vmatprep.subr.mxu0 0.0
        %613 = vmatpush1.msra.mxu0 0.0
        %614 = vmatprep.subr.mxu0 0.0
        %615 = vmatpush1.msra.mxu0 0.0
        %616 = vmatprep.subr.mxu0 0.0
        %617 = vmatpush1.msra.mxu0 0.0
        %618 = vmatprep.subr.mxu0 0.0
        %619 = vmatpush1.msra.mxu0 0.0
        %620 = vmatprep.subr.mxu0 0.0
        %621 = vmatpush1.msra.mxu0 0.0
        %622 = vmatprep.subr.mxu0 0.0
        %623 = vmatpush1.msra.mxu0 0.0
        %624 = vmatprep.subr.mxu0 0.0
        %625 = vmatpush1.msra.mxu0 0.0
        %626 = vmatprep.subr.mxu0 0.0
        %627 = vmatpush1.msra.mxu0 0.0
        %628 = vmatprep.subr.mxu0 0.0
        %629 = vmatpush1.msra.mxu0 0.0
        %630 = vmatprep.subr.mxu0 0.0
        %631 = vmatpush1.msra.mxu0 0.0
        %632 = vmatprep.subr.mxu0 0.0
        %633 = vmatpush1.msra.mxu0 0.0
        %634 = vmatprep.subr.mxu0 0.0
        %635 = vmatpush1.msra.mxu0 0.0
        %636 = vmatprep.subr.mxu0 0.0
        %637 = vmatpush1.msra.mxu0 0.0
        %638 = vmatprep.subr.mxu0 0.0
        %639 = vmatpush1.msra.mxu0 0.0
        %640 = vmatprep.subr.mxu0 0.0
        %641 = vmatpush1.msra.mxu0 0.0
        %642 = vmatprep.subr.mxu0 0.0
        %643 = vmatpush1.msra.mxu0 0.0
        %644 = vmatprep.subr.mxu0 0.0
        %645 = vmatpush1.msra.mxu0 0.0
        %646 = vmatprep.subr.mxu0 0.0
        %647 = vmatpush1.msra.mxu0 0.0
        %648 = vmatprep.subr.mxu0 0.0
        %649 = vmatpush1.msra.mxu0 0.0
        %650 = vmatprep.subr.mxu0 0.0
        %651 = vmatpush1.msra.mxu0 0.0
        %652 = vmatprep.subr.mxu0 0.0
        %653 = vmatpush1.msra.mxu0 0.0
        %654 = vmatprep.subr.mxu0 0.0
        %655 = vmatpush1.msra.mxu0 0.0
        %656 = vmatprep.subr.mxu0 0.0
        %657 = vmatpush1.msra.mxu0 0.0
        %658 = vmatprep.subr.mxu0 0.0
        %659 = vmatpush1.msra.mxu0 0.0
        %660 = vmatprep.subr.mxu0 0.0
        %661 = vmatpush1.msra.mxu0 0.0
        %662 = vmatprep.mubr.f32.mxu0 0.0
        %663 = vmatmul.mubr.f32.gmra.mrb[0].mxu0 %v596
        %v664 = vpop.f32.mrb[0].mxu0
        %v665 = vadd.f32 0.0, %v664
        %v666 = vpop.f32.mrb[0].mxu0
        %667 = vdwg.mxu0
        %v668 = vmul.f32 %v509, 0.35355338
        %vm669 = vcmask 64512
        %v671 = vsel %vm669, %v668, 0
        %v674 = vsel %vm669, %v587, 0
        %676 = vmatprep.subr.mxu0 0.0
        %677 = vmatpush1.xpose.msra.mxu0 %v674
        %678 = vmatprep.subr.mxu0 0.0
        %679 = vmatpush1.xpose.msra.mxu0 0.0
        %680 = vmatprep.subr.mxu0 0.0
        %681 = vmatpush1.xpose.msra.mxu0 0.0
        %682 = vmatprep.subr.mxu0 0.0
        %683 = vmatpush1.xpose.msra.mxu0 0.0
        %684 = vmatprep.subr.mxu0 0.0
        %685 = vmatpush1.xpose.msra.mxu0 0.0
        %686 = vmatprep.subr.mxu0 0.0
        %687 = vmatpush1.xpose.msra.mxu0 0.0
        %688 = vmatprep.subr.mxu0 0.0
        %689 = vmatpush1.xpose.msra.mxu0 0.0
        %690 = vmatprep.subr.mxu0 0.0
        %691 = vmatpush1.xpose.msra.mxu0 0.0
        %692 = vmatprep.subr.mxu0 0.0
        %693 = vmatpush1.xpose.msra.mxu0 0.0
        %694 = vmatprep.subr.mxu0 0.0
        %695 = vmatpush1.xpose.msra.mxu0 0.0
        %696 = vmatprep.subr.mxu0 0.0
        %697 = vmatpush1.xpose.msra.mxu0 0.0
        %698 = vmatprep.subr.mxu0 0.0
        %699 = vmatpush1.xpose.msra.mxu0 0.0
        %700 = vmatprep.subr.mxu0 0.0
        %701 = vmatpush1.xpose.msra.mxu0 0.0
        %702 = vmatprep.subr.mxu0 0.0
        %703 = vmatpush1.xpose.msra.mxu0 0.0
        %704 = vmatprep.subr.mxu0 0.0
        %705 = vmatpush1.xpose.msra.mxu0 0.0
        %706 = vmatprep.subr.mxu0 0.0
        %707 = vmatpush1.xpose.msra.mxu0 0.0
        %708 = vmatprep.subr.mxu0 0.0
        %709 = vmatpush1.xpose.msra.mxu0 0.0
        %710 = vmatprep.subr.mxu0 0.0
        %711 = vmatpush1.xpose.msra.mxu0 0.0
        %712 = vmatprep.subr.mxu0 0.0
        %713 = vmatpush1.xpose.msra.mxu0 0.0
        %714 = vmatprep.subr.mxu0 0.0
        %715 = vmatpush1.xpose.msra.mxu0 0.0
        %716 = vmatprep.subr.mxu0 0.0
        %717 = vmatpush1.xpose.msra.mxu0 0.0
        %718 = vmatprep.subr.mxu0 0.0
        %719 = vmatpush1.xpose.msra.mxu0 0.0
        %720 = vmatprep.subr.mxu0 0.0
        %721 = vmatpush1.xpose.msra.mxu0 0.0
        %722 = vmatprep.subr.mxu0 0.0
        %723 = vmatpush1.xpose.msra.mxu0 0.0
        %724 = vmatprep.subr.mxu0 0.0
        %725 = vmatpush1.xpose.msra.mxu0 0.0
        %726 = vmatprep.subr.mxu0 0.0
        %727 = vmatpush1.xpose.msra.mxu0 0.0
        %728 = vmatprep.subr.mxu0 0.0
        %729 = vmatpush1.xpose.msra.mxu0 0.0
        %730 = vmatprep.subr.mxu0 0.0
        %731 = vmatpush1.xpose.msra.mxu0 0.0
        %732 = vmatprep.subr.mxu0 0.0
        %733 = vmatpush1.xpose.msra.mxu0 0.0
        %734 = vmatprep.subr.mxu0 0.0
        %735 = vmatpush1.xpose.msra.mxu0 0.0
        %736 = vmatprep.subr.mxu0 0.0
        %737 = vmatpush1.xpose.msra.mxu0 0.0
        %738 = vmatprep.subr.mxu0 0.0
        %739 = vmatpush1.xpose.msra.mxu0 0.0
        %740 = vmatprep.mubr.f32.mxu0 0.0
        %741 = vmatmul.mubr.f32.gmra.mrb[0].mxu0 %v671
        %v742 = vpop.f32.mrb[0].mxu0
        %v743 = vadd.f32 0.0, %v742
        %v744 = vpop.f32.mrb[0].mxu0
        %745 = vdwg.mxu0
        %v746 = vsel %vm669, %v743, -inf
        %747 = vmax.xlane.f32.xlu0 %v746
        %v748 = vpop.xlane.xlu0 %747
        %v749 = vsub.f32 %v743, %v748
        %v750 = vmul.f32 %v749, 1.442695
        %v751 = vpow.pop %v750
        %v752 = vsel %vm669, %v751, 0.0
        %753 = vadd.xlane.f32.xlu0 %v752
        %v754 = vpop.xlane.xlu0 %753
        %v755 = vrcp.pop %v754
        %v756 = vmul.f32 %v751, %v755
        %v758 = vsel %vm669, %v756, 0
        %760 = vmatprep.subr.mxu0 0.0
        %761 = vmatpush1.msra.mxu0 %v665
        %762 = vmatprep.subr.mxu0 0.0
        %763 = vmatpush1.msra.mxu0 0.0
        %764 = vmatprep.subr.mxu0 0.0
        %765 = vmatpush1.msra.mxu0 0.0
        %766 = vmatprep.subr.mxu0 0.0
        %767 = vmatpush1.msra.mxu0 0.0
        %768 = vmatprep.subr.mxu0 0.0
        %769 = vmatpush1.msra.mxu0 0.0
        %770 = vmatprep.subr.mxu0 0.0
        %771 = vmatpush1.msra.mxu0 0.0
        %772 = vmatprep.subr.mxu0 0.0
        %773 = vmatpush1.msra.mxu0 0.0
        %774 = vmatprep.subr.mxu0 0.0
        %775 = vmatpush1.msra.mxu0 0.0
        %776 = vmatprep.subr.mxu0 0.0
        %777 = vmatpush1.msra.mxu0 0.0
        %778 = vmatprep.subr.mxu0 0.0
        %779 = vmatpush1.msra.mxu0 0.0
        %780 = vmatprep.subr.mxu0 0.0
        %781 = vmatpush1.msra.mxu0 0.0
        %782 = vmatprep.subr.mxu0 0.0
        %783 = vmatpush1.msra.mxu0 0.0
        %784 = vmatprep.subr.mxu0 0.0
        %785 = vmatpush1.msra.mxu0 0.0
        %786 = vmatprep.subr.mxu0 0.0
        %787 = vmatpush1.msra.mxu0 0.0
        %788 = vmatprep.subr.mxu0 0.0
        %789 = vmatpush1.msra.mxu0 0.0
        %790 = vmatprep.subr.mxu0 0.0
        %791 = vmatpush1.msra.mxu0 0.0
        %792 = vmatprep.subr.mxu0 0.0
        %793 = vmatpush1.msra.mxu0 0.0
        %794 = vmatprep.subr.mxu0 0.0
        %795 = vmatpush1.msra.mxu0 0.0
        %796 = vmatprep.subr.mxu0 0.0
        %797 = vmatpush1.msra.mxu0 0.0
        %798 = vmatprep.subr.mxu0 0.0
        %799 = vmatpush1.msra.mxu0 0.0
        %800 = vmatprep.subr.mxu0 0.0
        %801 = vmatpush1.msra.mxu0 0.0
        %802 = vmatprep.subr.mxu0 0.0
        %803 = vmatpush1.msra.mxu0 0.0
        %804 = vmatprep.subr.mxu0 0.0
        %805 = vmatpush1.msra.mxu0 0.0
        %806 = vmatprep.subr.mxu0 0.0
        %807 = vmatpush1.msra.mxu0 0.0
        %808 = vmatprep.subr.mxu0 0.0
        %809 = vmatpush1.msra.mxu0 0.0
        %810 = vmatprep.subr.mxu0 0.0
        %811 = vmatpush1.msra.mxu0 0.0
        %812 = vmatprep.subr.mxu0 0.0
        %813 = vmatpush1.msra.mxu0 0.0
        %814 = vmatprep.subr.mxu0 0.0
        %815 = vmatpush1.msra.mxu0 0.0
        %816 = vmatprep.subr.mxu0 0.0
        %817 = vmatpush1.msra.mxu0 0.0
        %818 = vmatprep.subr.mxu0 0.0
        %819 = vmatpush1.msra.mxu0 0.0
        %820 = vmatprep.subr.mxu0 0.0
        %821 = vmatpush1.msra.mxu0 0.0
        %822 = vmatprep.subr.mxu0 0.0
        %823 = vmatpush1.msra.mxu0 0.0
        %824 = vmatprep.mubr.f32.mxu0 0.0
        %825 = vmatmul.mubr.f32.gmra.mrb[0].mxu0 %v758
        %v826 = vpop.f32.mrb[0].mxu0
        %v827 = vadd.f32 0.0, %v826
        %v828 = vpop.f32.mrb[0].mxu0
        %829 = vdwg.mxu0
        %v830 = vld [vmem:[#allocation11] sm:$0xff]
        %831 = vrot.lane.b32.xlu0 %v668, 120
        %v832 = vpop.permute.xlu0 %831
        %833 = vrot.lane.b32.xlu0 %v587, 120
        %v834 = vpop.permute.xlu0 %833
        %v835 = vsel %vm669, %v832, 0
        %v837 = vsel %vm669, %v834, 0
        %839 = vmatprep.subr.mxu0 0.0
        %840 = vmatpush1.xpose.msra.mxu0 %v837
        %841 = vmatprep.subr.mxu0 0.0
        %842 = vmatpush1.xpose.msra.mxu0 0.0
        %843 = vmatprep.subr.mxu0 0.0
        %844 = vmatpush1.xpose.msra.mxu0 0.0
        %845 = vmatprep.subr.mxu0 0.0
        %846 = vmatpush1.xpose.msra.mxu0 0.0
        %847 = vmatprep.subr.mxu0 0.0
        %848 = vmatpush1.xpose.msra.mxu0 0.0
        %849 = vmatprep.subr.mxu0 0.0
        %850 = vmatpush1.xpose.msra.mxu0 0.0
        %851 = vmatprep.subr.mxu0 0.0
        %852 = vmatpush1.xpose.msra.mxu0 0.0
        %853 = vmatprep.subr.mxu0 0.0
        %854 = vmatpush1.xpose.msra.mxu0 0.0
        %855 = vmatprep.subr.mxu0 0.0
        %856 = vmatpush1.xpose.msra.mxu0 0.0
        %857 = vmatprep.subr.mxu0 0.0
        %858 = vmatpush1.xpose.msra.mxu0 0.0
        %859 = vmatprep.subr.mxu0 0.0
        %860 = vmatpush1.xpose.msra.mxu0 0.0
        %861 = vmatprep.subr.mxu0 0.0
        %862 = vmatpush1.xpose.msra.mxu0 0.0
        %863 = vmatprep.subr.mxu0 0.0
        %864 = vmatpush1.xpose.msra.mxu0 0.0
        %865 = vmatprep.subr.mxu0 0.0
        %866 = vmatpush1.xpose.msra.mxu0 0.0
        %867 = vmatprep.subr.mxu0 0.0
        %868 = vmatpush1.xpose.msra.mxu0 0.0
        %869 = vmatprep.subr.mxu0 0.0
        %870 = vmatpush1.xpose.msra.mxu0 0.0
        %871 = vmatprep.subr.mxu0 0.0
        %872 = vmatpush1.xpose.msra.mxu0 0.0
        %873 = vmatprep.subr.mxu0 0.0
        %874 = vmatpush1.xpose.msra.mxu0 0.0
        %875 = vmatprep.subr.mxu0 0.0
        %876 = vmatpush1.xpose.msra.mxu0 0.0
        %877 = vmatprep.subr.mxu0 0.0
        %878 = vmatpush1.xpose.msra.mxu0 0.0
        %879 = vmatprep.subr.mxu0 0.0
        %880 = vmatpush1.xpose.msra.mxu0 0.0
        %881 = vmatprep.subr.mxu0 0.0
        %882 = vmatpush1.xpose.msra.mxu0 0.0
        %883 = vmatprep.subr.mxu0 0.0
        %884 = vmatpush1.xpose.msra.mxu0 0.0
        %885 = vmatprep.subr.mxu0 0.0
        %886 = vmatpush1.xpose.msra.mxu0 0.0
        %887 = vmatprep.subr.mxu0 0.0
        %888 = vmatpush1.xpose.msra.mxu0 0.0
        %889 = vmatprep.subr.mxu0 0.0
        %890 = vmatpush1.xpose.msra.mxu0 0.0
        %891 = vmatprep.subr.mxu0 0.0
        %892 = vmatpush1.xpose.msra.mxu0 0.0
        %893 = vmatprep.subr.mxu0 0.0
        %894 = vmatpush1.xpose.msra.mxu0 0.0
        %895 = vmatprep.subr.mxu0 0.0
        %896 = vmatpush1.xpose.msra.mxu0 0.0
        %897 = vmatprep.subr.mxu0 0.0
        %898 = vmatpush1.xpose.msra.mxu0 0.0
        %899 = vmatprep.subr.mxu0 0.0
        %900 = vmatpush1.xpose.msra.mxu0 0.0
        %901 = vmatprep.subr.mxu0 0.0
        %902 = vmatpush1.xpose.msra.mxu0 0.0
        %903 = vmatprep.mubr.f32.mxu0 0.0
        %904 = vmatmul.mubr.f32.gmra.mrb[0].mxu0 %v835
        %v905 = vpop.f32.mrb[0].mxu0
        %v906 = vadd.f32 0.0, %v905
        %v907 = vpop.f32.mrb[0].mxu0
        %908 = vdwg.mxu0
        %v909 = vsel %vm669, %v906, -inf
        %910 = vmax.xlane.f32.xlu0 %v909
        %v911 = vpop.xlane.xlu0 %910
        %v912 = vsub.f32 %v906, %v911
        %v913 = vmul.f32 %v912, 1.442695
        %v914 = vpow.pop %v913
        %v915 = vsel %vm669, %v914, 0.0
        %916 = vadd.xlane.f32.xlu0 %v915
        %v917 = vpop.xlane.xlu0 %916
        %v918 = vrcp.pop %v917
        %v919 = vmul.f32 %v914, %v918
        %921 = vrot.lane.b32.xlu0 %v665, 120
        %v922 = vpop.permute.xlu0 %921
        %v925 = vsel %vm669, %v919, 0
        %927 = vmatprep.subr.mxu0 0.0
        %928 = vmatpush1.msra.mxu0 %v922
        %929 = vmatprep.subr.mxu0 0.0
        %930 = vmatpush1.msra.mxu0 0.0
        %931 = vmatprep.subr.mxu0 0.0
        %932 = vmatpush1.msra.mxu0 0.0
        %933 = vmatprep.subr.mxu0 0.0
        %934 = vmatpush1.msra.mxu0 0.0
        %935 = vmatprep.subr.mxu0 0.0
        %936 = vmatpush1.msra.mxu0 0.0
        %937 = vmatprep.subr.mxu0 0.0
        %938 = vmatpush1.msra.mxu0 0.0
        %939 = vmatprep.subr.mxu0 0.0
        %940 = vmatpush1.msra.mxu0 0.0
        %941 = vmatprep.subr.mxu0 0.0
        %942 = vmatpush1.msra.mxu0 0.0
        %943 = vmatprep.subr.mxu0 0.0
        %944 = vmatpush1.msra.mxu0 0.0
        %945 = vmatprep.subr.mxu0 0.0
        %946 = vmatpush1.msra.mxu0 0.0
        %947 = vmatprep.subr.mxu0 0.0
        %948 = vmatpush1.msra.mxu0 0.0
        %949 = vmatprep.subr.mxu0 0.0
        %950 = vmatpush1.msra.mxu0 0.0
        %951 = vmatprep.subr.mxu0 0.0
        %952 = vmatpush1.msra.mxu0 0.0
        %953 = vmatprep.subr.mxu0 0.0
        %954 = vmatpush1.msra.mxu0 0.0
        %955 = vmatprep.subr.mxu0 0.0
        %956 = vmatpush1.msra.mxu0 0.0
        %957 = vmatprep.subr.mxu0 0.0
        %958 = vmatpush1.msra.mxu0 0.0
        %959 = vmatprep.subr.mxu0 0.0
        %960 = vmatpush1.msra.mxu0 0.0
        %961 = vmatprep.subr.mxu0 0.0
        %962 = vmatpush1.msra.mxu0 0.0
        %963 = vmatprep.subr.mxu0 0.0
        %964 = vmatpush1.msra.mxu0 0.0
        %965 = vmatprep.subr.mxu0 0.0
        %966 = vmatpush1.msra.mxu0 0.0
        %967 = vmatprep.subr.mxu0 0.0
        %968 = vmatpush1.msra.mxu0 0.0
        %969 = vmatprep.subr.mxu0 0.0
        %970 = vmatpush1.msra.mxu0 0.0
        %971 = vmatprep.subr.mxu0 0.0
        %972 = vmatpush1.msra.mxu0 0.0
        %973 = vmatprep.subr.mxu0 0.0
        %974 = vmatpush1.msra.mxu0 0.0
        %975 = vmatprep.subr.mxu0 0.0
        %976 = vmatpush1.msra.mxu0 0.0
        %977 = vmatprep.subr.mxu0 0.0
        %978 = vmatpush1.msra.mxu0 0.0
        %979 = vmatprep.subr.mxu0 0.0
        %980 = vmatpush1.msra.mxu0 0.0
        %981 = vmatprep.subr.mxu0 0.0
        %982 = vmatpush1.msra.mxu0 0.0
        %983 = vmatprep.subr.mxu0 0.0
        %984 = vmatpush1.msra.mxu0 0.0
        %985 = vmatprep.subr.mxu0 0.0
        %986 = vmatpush1.msra.mxu0 0.0
        %987 = vmatprep.subr.mxu0 0.0
        %988 = vmatpush1.msra.mxu0 0.0
        %989 = vmatprep.subr.mxu0 0.0
        %990 = vmatpush1.msra.mxu0 0.0
        %991 = vmatprep.mubr.f32.mxu0 0.0
        %992 = vmatmul.mubr.f32.gmra.mrb[0].mxu0 %v925
        %v993 = vpop.f32.mrb[0].mxu0
        %v994 = vadd.f32 0.0, %v993
        %v995 = vpop.f32.mrb[0].mxu0
        %996 = vdwg.mxu0
        %v997 = vld [vmem:[#allocation11 + $0x8] sm:$0xff]
        %v999 = vsel %vm669, %v994, 0
        %1001 = vmatprep.subr.mxu0 0.0
        %1002 = vmatpush1.msra.mxu0 %v997
        %1003 = vmatprep.subr.mxu0 0.0
        %1004 = vmatpush1.msra.mxu0 0.0
        %1005 = vmatprep.subr.mxu0 0.0
        %1006 = vmatpush1.msra.mxu0 0.0
        %1007 = vmatprep.subr.mxu0 0.0
        %1008 = vmatpush1.msra.mxu0 0.0
        %1009 = vmatprep.subr.mxu0 0.0
        %1010 = vmatpush1.msra.mxu0 0.0
        %1011 = vmatprep.subr.mxu0 0.0
        %1012 = vmatpush1.msra.mxu0 0.0
        %1013 = vmatprep.subr.mxu0 0.0
        %1014 = vmatpush1.msra.mxu0 0.0
        %1015 = vmatprep.subr.mxu0 0.0
        %1016 = vmatpush1.msra.mxu0 0.0
        %1017 = vmatprep.subr.mxu0 0.0
        %1018 = vmatpush1.msra.mxu0 0.0
        %1019 = vmatprep.subr.mxu0 0.0
        %1020 = vmatpush1.msra.mxu0 0.0
        %1021 = vmatprep.subr.mxu0 0.0
        %1022 = vmatpush1.msra.mxu0 0.0
        %1023 = vmatprep.subr.mxu0 0.0
        %1024 = vmatpush1.msra.mxu0 0.0
        %1025 = vmatprep.subr.mxu0 0.0
        %1026 = vmatpush1.msra.mxu0 0.0
        %1027 = vmatprep.subr.mxu0 0.0
        %1028 = vmatpush1.msra.mxu0 0.0
        %1029 = vmatprep.subr.mxu0 0.0
        %1030 = vmatpush1.msra.mxu0 0.0
        %1031 = vmatprep.subr.mxu0 0.0
        %1032 = vmatpush1.msra.mxu0 0.0
        %1033 = vmatprep.subr.mxu0 0.0
        %1034 = vmatpush1.msra.mxu0 0.0
        %1035 = vmatprep.subr.mxu0 0.0
        %1036 = vmatpush1.msra.mxu0 0.0
        %1037 = vmatprep.subr.mxu0 0.0
        %1038 = vmatpush1.msra.mxu0 0.0
        %1039 = vmatprep.subr.mxu0 0.0
        %1040 = vmatpush1.msra.mxu0 0.0
        %1041 = vmatprep.subr.mxu0 0.0
        %1042 = vmatpush1.msra.mxu0 0.0
        %1043 = vmatprep.subr.mxu0 0.0
        %1044 = vmatpush1.msra.mxu0 0.0
        %1045 = vmatprep.subr.mxu0 0.0
        %1046 = vmatpush1.msra.mxu0 0.0
        %1047 = vmatprep.subr.mxu0 0.0
        %1048 = vmatpush1.msra.mxu0 0.0
        %1049 = vmatprep.subr.mxu0 0.0
        %1050 = vmatpush1.msra.mxu0 0.0
        %1051 = vmatprep.subr.mxu0 0.0
        %1052 = vmatpush1.msra.mxu0 0.0
        %1053 = vmatprep.subr.mxu0 0.0
        %1054 = vmatpush1.msra.mxu0 0.0
        %1055 = vmatprep.subr.mxu0 0.0
        %1056 = vmatpush1.msra.mxu0 0.0
        %1057 = vmatprep.subr.mxu0 0.0
        %1058 = vmatpush1.msra.mxu0 0.0
        %1059 = vmatprep.subr.mxu0 0.0
        %1060 = vmatpush1.msra.mxu0 0.0
        %1061 = vmatprep.subr.mxu0 0.0
        %1062 = vmatpush1.msra.mxu0 0.0
        %1063 = vmatprep.subr.mxu0 0.0
        %1064 = vmatpush1.msra.mxu0 0.0
        %1065 = vmatprep.mubr.f32.mxu0 0.0
        %1066 = vmatmul.mubr.f32.gmra.mrb[0].mxu0 %v999
        %v1067 = vpop.f32.mrb[0].mxu0
        %v1068 = vadd.f32 0.0, %v1067
        %v1069 = vpop.f32.mrb[0].mxu0
        %1070 = vdwg.mxu0
        %v1072 = vsel %vm669, %v827, 0
        %1074 = vmatprep.subr.mxu0 0.0
        %1075 = vmatpush1.msra.mxu0 %v830
        %1076 = vmatprep.subr.mxu0 0.0
        %1077 = vmatpush1.msra.mxu0 0.0
        %1078 = vmatprep.subr.mxu0 0.0
        %1079 = vmatpush1.msra.mxu0 0.0
        %1080 = vmatprep.subr.mxu0 0.0
        %1081 = vmatpush1.msra.mxu0 0.0
        %1082 = vmatprep.subr.mxu0 0.0
        %1083 = vmatpush1.msra.mxu0 0.0
        %1084 = vmatprep.subr.mxu0 0.0
        %1085 = vmatpush1.msra.mxu0 0.0
        %1086 = vmatprep.subr.mxu0 0.0
        %1087 = vmatpush1.msra.mxu0 0.0
        %1088 = vmatprep.subr.mxu0 0.0
        %1089 = vmatpush1.msra.mxu0 0.0
        %1090 = vmatprep.subr.mxu0 0.0
        %1091 = vmatpush1.msra.mxu0 0.0
        %1092 = vmatprep.subr.mxu0 0.0
        %1093 = vmatpush1.msra.mxu0 0.0
        %1094 = vmatprep.subr.mxu0 0.0
        %1095 = vmatpush1.msra.mxu0 0.0
        %1096 = vmatprep.subr.mxu0 0.0
        %1097 = vmatpush1.msra.mxu0 0.0
        %1098 = vmatprep.subr.mxu0 0.0
        %1099 = vmatpush1.msra.mxu0 0.0
        %1100 = vmatprep.subr.mxu0 0.0
        %1101 = vmatpush1.msra.mxu0 0.0
        %1102 = vmatprep.subr.mxu0 0.0
        %1103 = vmatpush1.msra.mxu0 0.0
        %1104 = vmatprep.subr.mxu0 0.0
        %1105 = vmatpush1.msra.mxu0 0.0
        %1106 = vmatprep.subr.mxu0 0.0
        %1107 = vmatpush1.msra.mxu0 0.0
        %1108 = vmatprep.subr.mxu0 0.0
        %1109 = vmatpush1.msra.mxu0 0.0
        %1110 = vmatprep.subr.mxu0 0.0
        %1111 = vmatpush1.msra.mxu0 0.0
        %1112 = vmatprep.subr.mxu0 0.0
        %1113 = vmatpush1.msra.mxu0 0.0
        %1114 = vmatprep.subr.mxu0 0.0
        %1115 = vmatpush1.msra.mxu0 0.0
        %1116 = vmatprep.subr.mxu0 0.0
        %1117 = vmatpush1.msra.mxu0 0.0
        %1118 = vmatprep.subr.mxu0 0.0
        %1119 = vmatpush1.msra.mxu0 0.0
        %1120 = vmatprep.subr.mxu0 0.0
        %1121 = vmatpush1.msra.mxu0 0.0
        %1122 = vmatprep.subr.mxu0 0.0
        %1123 = vmatpush1.msra.mxu0 0.0
        %1124 = vmatprep.subr.mxu0 0.0
        %1125 = vmatpush1.msra.mxu0 0.0
        %1126 = vmatprep.subr.mxu0 0.0
        %1127 = vmatpush1.msra.mxu0 0.0
        %1128 = vmatprep.subr.mxu0 0.0
        %1129 = vmatpush1.msra.mxu0 0.0
        %1130 = vmatprep.subr.mxu0 0.0
        %1131 = vmatpush1.msra.mxu0 0.0
        %1132 = vmatprep.subr.mxu0 0.0
        %1133 = vmatpush1.msra.mxu0 0.0
        %1134 = vmatprep.subr.mxu0 0.0
        %1135 = vmatpush1.msra.mxu0 0.0
        %1136 = vmatprep.subr.mxu0 0.0
        %1137 = vmatpush1.msra.mxu0 0.0
        %1138 = vmatprep.mubr.f32.mxu0 0.0
        %1139 = vmatmul.mubr.f32.gmra.mrb[0].mxu0 %v1072
        %v1140 = vpop.f32.mrb[0].mxu0
        %v1141 = vadd.f32 %v1068, %v1140
        %v1142 = vpop.f32.mrb[0].mxu0
        %1143 = vdwg.mxu0
        %1144 = vrot.lane.b32.xlu0 %v668, 112
        %v1145 = vpop.permute.xlu0 %1144
        %1146 = vrot.lane.b32.xlu0 %v587, 112
        %v1147 = vpop.permute.xlu0 %1146
        %v1148 = vsel %vm669, %v1145, 0
        %v1150 = vsel %vm669, %v1147, 0
        %1152 = vmatprep.subr.mxu0 0.0
        %1153 = vmatpush1.xpose.msra.mxu0 %v1150
        %1154 = vmatprep.subr.mxu0 0.0
        %1155 = vmatpush1.xpose.msra.mxu0 0.0
        %1156 = vmatprep.subr.mxu0 0.0
        %1157 = vmatpush1.xpose.msra.mxu0 0.0
        %1158 = vmatprep.subr.mxu0 0.0
        %1159 = vmatpush1.xpose.msra.mxu0 0.0
        %1160 = vmatprep.subr.mxu0 0.0
        %1161 = vmatpush1.xpose.msra.mxu0 0.0
        %1162 = vmatprep.subr.mxu0 0.0
        %1163 = vmatpush1.xpose.msra.mxu0 0.0
        %1164 = vmatprep.subr.mxu0 0.0
        %1165 = vmatpush1.xpose.msra.mxu0 0.0
        %1166 = vmatprep.subr.mxu0 0.0
        %1167 = vmatpush1.xpose.msra.mxu0 0.0
        %1168 = vmatprep.subr.mxu0 0.0
        %1169 = vmatpush1.xpose.msra.mxu0 0.0
        %1170 = vmatprep.subr.mxu0 0.0
        %1171 = vmatpush1.xpose.msra.mxu0 0.0
        %1172 = vmatprep.subr.mxu0 0.0
        %1173 = vmatpush1.xpose.msra.mxu0 0.0
        %1174 = vmatprep.subr.mxu0 0.0
        %1175 = vmatpush1.xpose.msra.mxu0 0.0
        %1176 = vmatprep.subr.mxu0 0.0
        %1177 = vmatpush1.xpose.msra.mxu0 0.0
        %1178 = vmatprep.subr.mxu0 0.0
        %1179 = vmatpush1.xpose.msra.mxu0 0.0
        %1180 = vmatprep.subr.mxu0 0.0
        %1181 = vmatpush1.xpose.msra.mxu0 0.0
        %1182 = vmatprep.subr.mxu0 0.0
        %1183 = vmatpush1.xpose.msra.mxu0 0.0
        %1184 = vmatprep.subr.mxu0 0.0
        %1185 = vmatpush1.xpose.msra.mxu0 0.0
        %1186 = vmatprep.subr.mxu0 0.0
        %1187 = vmatpush1.xpose.msra.mxu0 0.0
        %1188 = vmatprep.subr.mxu0 0.0
        %1189 = vmatpush1.xpose.msra.mxu0 0.0
        %1190 = vmatprep.subr.mxu0 0.0
        %1191 = vmatpush1.xpose.msra.mxu0 0.0
        %1192 = vmatprep.subr.mxu0 0.0
        %1193 = vmatpush1.xpose.msra.mxu0 0.0
        %1194 = vmatprep.subr.mxu0 0.0
        %1195 = vmatpush1.xpose.msra.mxu0 0.0
        %1196 = vmatprep.subr.mxu0 0.0
        %1197 = vmatpush1.xpose.msra.mxu0 0.0
        %1198 = vmatprep.subr.mxu0 0.0
        %1199 = vmatpush1.xpose.msra.mxu0 0.0
        %1200 = vmatprep.subr.mxu0 0.0
        %1201 = vmatpush1.xpose.msra.mxu0 0.0
        %1202 = vmatprep.subr.mxu0 0.0
        %1203 = vmatpush1.xpose.msra.mxu0 0.0
        %1204 = vmatprep.subr.mxu0 0.0
        %1205 = vmatpush1.xpose.msra.mxu0 0.0
        %1206 = vmatprep.subr.mxu0 0.0
        %1207 = vmatpush1.xpose.msra.mxu0 0.0
        %1208 = vmatprep.subr.mxu0 0.0
        %1209 = vmatpush1.xpose.msra.mxu0 0.0
        %1210 = vmatprep.subr.mxu0 0.0
        %1211 = vmatpush1.xpose.msra.mxu0 0.0
        %1212 = vmatprep.subr.mxu0 0.0
        %1213 = vmatpush1.xpose.msra.mxu0 0.0
        %1214 = vmatprep.subr.mxu0 0.0
        %1215 = vmatpush1.xpose.msra.mxu0 0.0
        %1216 = vmatprep.mubr.f32.mxu0 0.0
        %1217 = vmatmul.mubr.f32.gmra.mrb[0].mxu0 %v1148
        %v1218 = vpop.f32.mrb[0].mxu0
        %v1219 = vadd.f32 0.0, %v1218
        %v1220 = vpop.f32.mrb[0].mxu0
        %1221 = vdwg.mxu0
        %v1222 = vsel %vm669, %v1219, -inf
        %1223 = vmax.xlane.f32.xlu0 %v1222
        %v1224 = vpop.xlane.xlu0 %1223
        %v1225 = vsub.f32 %v1219, %v1224
        %v1226 = vmul.f32 %v1225, 1.442695
        %v1227 = vpow.pop %v1226
        %v1228 = vsel %vm669, %v1227, 0.0
        %1229 = vadd.xlane.f32.xlu0 %v1228
        %v1230 = vpop.xlane.xlu0 %1229
        %v1231 = vrcp.pop %v1230
        %v1232 = vmul.f32 %v1227, %v1231
        %1233 = vrot.lane.b32.xlu0 %v665, 112
        %v1234 = vpop.permute.xlu0 %1233
        %v1237 = vsel %vm669, %v1232, 0
        %1239 = vmatprep.subr.mxu0 0.0
        %1240 = vmatpush1.msra.mxu0 %v1234
        %1241 = vmatprep.subr.mxu0 0.0
        %1242 = vmatpush1.msra.mxu0 0.0
        %1243 = vmatprep.subr.mxu0 0.0
        %1244 = vmatpush1.msra.mxu0 0.0
        %1245 = vmatprep.subr.mxu0 0.0
        %1246 = vmatpush1.msra.mxu0 0.0
        %1247 = vmatprep.subr.mxu0 0.0
        %1248 = vmatpush1.msra.mxu0 0.0
        %1249 = vmatprep.subr.mxu0 0.0
        %1250 = vmatpush1.msra.mxu0 0.0
        %1251 = vmatprep.subr.mxu0 0.0
        %1252 = vmatpush1.msra.mxu0 0.0
        %1253 = vmatprep.subr.mxu0 0.0
        %1254 = vmatpush1.msra.mxu0 0.0
        %1255 = vmatprep.subr.mxu0 0.0
        %1256 = vmatpush1.msra.mxu0 0.0
        %1257 = vmatprep.subr.mxu0 0.0
        %1258 = vmatpush1.msra.mxu0 0.0
        %1259 = vmatprep.subr.mxu0 0.0
        %1260 = vmatpush1.msra.mxu0 0.0
        %1261 = vmatprep.subr.mxu0 0.0
        %1262 = vmatpush1.msra.mxu0 0.0
        %1263 = vmatprep.subr.mxu0 0.0
        %1264 = vmatpush1.msra.mxu0 0.0
        %1265 = vmatprep.subr.mxu0 0.0
        %1266 = vmatpush1.msra.mxu0 0.0
        %1267 = vmatprep.subr.mxu0 0.0
        %1268 = vmatpush1.msra.mxu0 0.0
        %1269 = vmatprep.subr.mxu0 0.0
        %1270 = vmatpush1.msra.mxu0 0.0
        %1271 = vmatprep.subr.mxu0 0.0
        %1272 = vmatpush1.msra.mxu0 0.0
        %1273 = vmatprep.subr.mxu0 0.0
        %1274 = vmatpush1.msra.mxu0 0.0
        %1275 = vmatprep.subr.mxu0 0.0
        %1276 = vmatpush1.msra.mxu0 0.0
        %1277 = vmatprep.subr.mxu0 0.0
        %1278 = vmatpush1.msra.mxu0 0.0
        %1279 = vmatprep.subr.mxu0 0.0
        %1280 = vmatpush1.msra.mxu0 0.0
        %1281 = vmatprep.subr.mxu0 0.0
        %1282 = vmatpush1.msra.mxu0 0.0
        %1283 = vmatprep.subr.mxu0 0.0
        %1284 = vmatpush1.msra.mxu0 0.0
        %1285 = vmatprep.subr.mxu0 0.0
        %1286 = vmatpush1.msra.mxu0 0.0
        %1287 = vmatprep.subr.mxu0 0.0
        %1288 = vmatpush1.msra.mxu0 0.0
        %1289 = vmatprep.subr.mxu0 0.0
        %1290 = vmatpush1.msra.mxu0 0.0
        %1291 = vmatprep.subr.mxu0 0.0
        %1292 = vmatpush1.msra.mxu0 0.0
        %1293 = vmatprep.subr.mxu0 0.0
        %1294 = vmatpush1.msra.mxu0 0.0
        %1295 = vmatprep.subr.mxu0 0.0
        %1296 = vmatpush1.msra.mxu0 0.0
        %1297 = vmatprep.subr.mxu0 0.0
        %1298 = vmatpush1.msra.mxu0 0.0
        %1299 = vmatprep.subr.mxu0 0.0
        %1300 = vmatpush1.msra.mxu0 0.0
        %1301 = vmatprep.subr.mxu0 0.0
        %1302 = vmatpush1.msra.mxu0 0.0
        %1303 = vmatprep.mubr.f32.mxu0 0.0
        %1304 = vmatmul.mubr.f32.gmra.mrb[0].mxu0 %v1237
        %v1305 = vpop.f32.mrb[0].mxu0
        %v1306 = vadd.f32 0.0, %v1305
        %v1307 = vpop.f32.mrb[0].mxu0
        %1308 = vdwg.mxu0
        %v1309 = vld [vmem:[#allocation11 + $0x10] sm:$0xff]
        %v1311 = vsel %vm669, %v1306, 0
        %1313 = vmatprep.subr.mxu0 0.0
        %1314 = vmatpush1.msra.mxu0 %v1309
        %1315 = vmatprep.subr.mxu0 0.0
        %1316 = vmatpush1.msra.mxu0 0.0
        %1317 = vmatprep.subr.mxu0 0.0
        %1318 = vmatpush1.msra.mxu0 0.0
        %1319 = vmatprep.subr.mxu0 0.0
        %1320 = vmatpush1.msra.mxu0 0.0
        %1321 = vmatprep.subr.mxu0 0.0
        %1322 = vmatpush1.msra.mxu0 0.0
        %1323 = vmatprep.subr.mxu0 0.0
        %1324 = vmatpush1.msra.mxu0 0.0
        %1325 = vmatprep.subr.mxu0 0.0
        %1326 = vmatpush1.msra.mxu0 0.0
        %1327 = vmatprep.subr.mxu0 0.0
        %1328 = vmatpush1.msra.mxu0 0.0
        %1329 = vmatprep.subr.mxu0 0.0
        %1330 = vmatpush1.msra.mxu0 0.0
        %1331 = vmatprep.subr.mxu0 0.0
        %1332 = vmatpush1.msra.mxu0 0.0
        %1333 = vmatprep.subr.mxu0 0.0
        %1334 = vmatpush1.msra.mxu0 0.0
        %1335 = vmatprep.subr.mxu0 0.0
        %1336 = vmatpush1.msra.mxu0 0.0
        %1337 = vmatprep.subr.mxu0 0.0
        %1338 = vmatpush1.msra.mxu0 0.0
        %1339 = vmatprep.subr.mxu0 0.0
        %1340 = vmatpush1.msra.mxu0 0.0
        %1341 = vmatprep.subr.mxu0 0.0
        %1342 = vmatpush1.msra.mxu0 0.0
        %1343 = vmatprep.subr.mxu0 0.0
        %1344 = vmatpush1.msra.mxu0 0.0
        %1345 = vmatprep.subr.mxu0 0.0
        %1346 = vmatpush1.msra.mxu0 0.0
        %1347 = vmatprep.subr.mxu0 0.0
        %1348 = vmatpush1.msra.mxu0 0.0
        %1349 = vmatprep.subr.mxu0 0.0
        %1350 = vmatpush1.msra.mxu0 0.0
        %1351 = vmatprep.subr.mxu0 0.0
        %1352 = vmatpush1.msra.mxu0 0.0
        %1353 = vmatprep.subr.mxu0 0.0
        %1354 = vmatpush1.msra.mxu0 0.0
        %1355 = vmatprep.subr.mxu0 0.0
        %1356 = vmatpush1.msra.mxu0 0.0
        %1357 = vmatprep.subr.mxu0 0.0
        %1358 = vmatpush1.msra.mxu0 0.0
        %1359 = vmatprep.subr.mxu0 0.0
        %1360 = vmatpush1.msra.mxu0 0.0
        %1361 = vmatprep.subr.mxu0 0.0
        %1362 = vmatpush1.msra.mxu0 0.0
        %1363 = vmatprep.subr.mxu0 0.0
        %1364 = vmatpush1.msra.mxu0 0.0
        %1365 = vmatprep.subr.mxu0 0.0
        %1366 = vmatpush1.msra.mxu0 0.0
        %1367 = vmatprep.subr.mxu0 0.0
        %1368 = vmatpush1.msra.mxu0 0.0
        %1369 = vmatprep.subr.mxu0 0.0
        %1370 = vmatpush1.msra.mxu0 0.0
        %1371 = vmatprep.subr.mxu0 0.0
        %1372 = vmatpush1.msra.mxu0 0.0
        %1373 = vmatprep.subr.mxu0 0.0
        %1374 = vmatpush1.msra.mxu0 0.0
        %1375 = vmatprep.subr.mxu0 0.0
        %1376 = vmatpush1.msra.mxu0 0.0
        %1377 = vmatprep.mubr.f32.mxu0 0.0
        %1378 = vmatmul.mubr.f32.gmra.mrb[0].mxu0 %v1311
        %v1379 = vpop.f32.mrb[0].mxu0
        %v1380 = vadd.f32 0.0, %v1379
        %v1381 = vpop.f32.mrb[0].mxu0
        %1382 = vdwg.mxu0
        %v1383 = vadd.f32 %v1141, %v1380
        %1384 = vrot.lane.b32.xlu0 %v668, 104
        %v1385 = vpop.permute.xlu0 %1384
        %1386 = vrot.lane.b32.xlu0 %v587, 104
        %v1387 = vpop.permute.xlu0 %1386
        %v1388 = vsel %vm669, %v1385, 0
        %v1390 = vsel %vm669, %v1387, 0
        %1392 = vmatprep.subr.mxu0 0.0
        %1393 = vmatpush1.xpose.msra.mxu0 %v1390
        %1394 = vmatprep.subr.mxu0 0.0
        %1395 = vmatpush1.xpose.msra.mxu0 0.0
        %1396 = vmatprep.subr.mxu0 0.0
        %1397 = vmatpush1.xpose.msra.mxu0 0.0
        %1398 = vmatprep.subr.mxu0 0.0
        %1399 = vmatpush1.xpose.msra.mxu0 0.0
        %1400 = vmatprep.subr.mxu0 0.0
        %1401 = vmatpush1.xpose.msra.mxu0 0.0
        %1402 = vmatprep.subr.mxu0 0.0
        %1403 = vmatpush1.xpose.msra.mxu0 0.0
        %1404 = vmatprep.subr.mxu0 0.0
        %1405 = vmatpush1.xpose.msra.mxu0 0.0
        %1406 = vmatprep.subr.mxu0 0.0
        %1407 = vmatpush1.xpose.msra.mxu0 0.0
        %1408 = vmatprep.subr.mxu0 0.0
        %1409 = vmatpush1.xpose.msra.mxu0 0.0
        %1410 = vmatprep.subr.mxu0 0.0
        %1411 = vmatpush1.xpose.msra.mxu0 0.0
        %1412 = vmatprep.subr.mxu0 0.0
        %1413 = vmatpush1.xpose.msra.mxu0 0.0
        %1414 = vmatprep.subr.mxu0 0.0
        %1415 = vmatpush1.xpose.msra.mxu0 0.0
        %1416 = vmatprep.subr.mxu0 0.0
        %1417 = vmatpush1.xpose.msra.mxu0 0.0
        %1418 = vmatprep.subr.mxu0 0.0
        %1419 = vmatpush1.xpose.msra.mxu0 0.0
        %1420 = vmatprep.subr.mxu0 0.0
        %1421 = vmatpush1.xpose.msra.mxu0 0.0
        %1422 = vmatprep.subr.mxu0 0.0
        %1423 = vmatpush1.xpose.msra.mxu0 0.0
        %1424 = vmatprep.subr.mxu0 0.0
        %1425 = vmatpush1.xpose.msra.mxu0 0.0
        %1426 = vmatprep.subr.mxu0 0.0
        %1427 = vmatpush1.xpose.msra.mxu0 0.0
        %1428 = vmatprep.subr.mxu0 0.0
        %1429 = vmatpush1.xpose.msra.mxu0 0.0
        %1430 = vmatprep.subr.mxu0 0.0
        %1431 = vmatpush1.xpose.msra.mxu0 0.0
        %1432 = vmatprep.subr.mxu0 0.0
        %1433 = vmatpush1.xpose.msra.mxu0 0.0
        %1434 = vmatprep.subr.mxu0 0.0
        %1435 = vmatpush1.xpose.msra.mxu0 0.0
        %1436 = vmatprep.subr.mxu0 0.0
        %1437 = vmatpush1.xpose.msra.mxu0 0.0
        %1438 = vmatprep.subr.mxu0 0.0
        %1439 = vmatpush1.xpose.msra.mxu0 0.0
        %1440 = vmatprep.subr.mxu0 0.0
        %1441 = vmatpush1.xpose.msra.mxu0 0.0
        %1442 = vmatprep.subr.mxu0 0.0
        %1443 = vmatpush1.xpose.msra.mxu0 0.0
        %1444 = vmatprep.subr.mxu0 0.0
        %1445 = vmatpush1.xpose.msra.mxu0 0.0
        %1446 = vmatprep.subr.mxu0 0.0
        %1447 = vmatpush1.xpose.msra.mxu0 0.0
        %1448 = vmatprep.subr.mxu0 0.0
        %1449 = vmatpush1.xpose.msra.mxu0 0.0
        %1450 = vmatprep.subr.mxu0 0.0
        %1451 = vmatpush1.xpose.msra.mxu0 0.0
        %1452 = vmatprep.subr.mxu0 0.0
        %1453 = vmatpush1.xpose.msra.mxu0 0.0
        %1454 = vmatprep.subr.mxu0 0.0
        %1455 = vmatpush1.xpose.msra.mxu0 0.0
        %1456 = vmatprep.mubr.f32.mxu0 0.0
        %1457 = vmatmul.mubr.f32.gmra.mrb[0].mxu0 %v1388
        %v1458 = vpop.f32.mrb[0].mxu0
        %v1459 = vadd.f32 0.0, %v1458
        %v1460 = vpop.f32.mrb[0].mxu0
        %1461 = vdwg.mxu0
        %v1462 = vsel %vm669, %v1459, -inf
        %1463 = vmax.xlane.f32.xlu0 %v1462
        %v1464 = vpop.xlane.xlu0 %1463
        %v1465 = vsub.f32 %v1459, %v1464
        %v1466 = vmul.f32 %v1465, 1.442695
        %v1467 = vpow.pop %v1466
        %v1468 = vsel %vm669, %v1467, 0.0
        %1469 = vadd.xlane.f32.xlu0 %v1468
        %v1470 = vpop.xlane.xlu0 %1469
        %v1471 = vrcp.pop %v1470
        %v1472 = vmul.f32 %v1467, %v1471
        %1473 = vrot.lane.b32.xlu0 %v665, 104
        %v1474 = vpop.permute.xlu0 %1473
        %v1477 = vsel %vm669, %v1472, 0
        %1479 = vmatprep.subr.mxu0 0.0
        %1480 = vmatpush1.msra.mxu0 %v1474
        %1481 = vmatprep.subr.mxu0 0.0
        %1482 = vmatpush1.msra.mxu0 0.0
        %1483 = vmatprep.subr.mxu0 0.0
        %1484 = vmatpush1.msra.mxu0 0.0
        %1485 = vmatprep.subr.mxu0 0.0
        %1486 = vmatpush1.msra.mxu0 0.0
        %1487 = vmatprep.subr.mxu0 0.0
        %1488 = vmatpush1.msra.mxu0 0.0
        %1489 = vmatprep.subr.mxu0 0.0
        %1490 = vmatpush1.msra.mxu0 0.0
        %1491 = vmatprep.subr.mxu0 0.0
        %1492 = vmatpush1.msra.mxu0 0.0
        %1493 = vmatprep.subr.mxu0 0.0
        %1494 = vmatpush1.msra.mxu0 0.0
        %1495 = vmatprep.subr.mxu0 0.0
        %1496 = vmatpush1.msra.mxu0 0.0
        %1497 = vmatprep.subr.mxu0 0.0
        %1498 = vmatpush1.msra.mxu0 0.0
        %1499 = vmatprep.subr.mxu0 0.0
        %1500 = vmatpush1.msra.mxu0 0.0
        %1501 = vmatprep.subr.mxu0 0.0
        %1502 = vmatpush1.msra.mxu0 0.0
        %1503 = vmatprep.subr.mxu0 0.0
        %1504 = vmatpush1.msra.mxu0 0.0
        %1505 = vmatprep.subr.mxu0 0.0
        %1506 = vmatpush1.msra.mxu0 0.0
        %1507 = vmatprep.subr.mxu0 0.0
        %1508 = vmatpush1.msra.mxu0 0.0
        %1509 = vmatprep.subr.mxu0 0.0
        %1510 = vmatpush1.msra.mxu0 0.0
        %1511 = vmatprep.subr.mxu0 0.0
        %1512 = vmatpush1.msra.mxu0 0.0
        %1513 = vmatprep.subr.mxu0 0.0
        %1514 = vmatpush1.msra.mxu0 0.0
        %1515 = vmatprep.subr.mxu0 0.0
        %1516 = vmatpush1.msra.mxu0 0.0
        %1517 = vmatprep.subr.mxu0 0.0
        %1518 = vmatpush1.msra.mxu0 0.0
        %1519 = vmatprep.subr.mxu0 0.0
        %1520 = vmatpush1.msra.mxu0 0.0
        %1521 = vmatprep.subr.mxu0 0.0
        %1522 = vmatpush1.msra.mxu0 0.0
        %1523 = vmatprep.subr.mxu0 0.0
        %1524 = vmatpush1.msra.mxu0 0.0
        %1525 = vmatprep.subr.mxu0 0.0
        %1526 = vmatpush1.msra.mxu0 0.0
        %1527 = vmatprep.subr.mxu0 0.0
        %1528 = vmatpush1.msra.mxu0 0.0
        %1529 = vmatprep.subr.mxu0 0.0
        %1530 = vmatpush1.msra.mxu0 0.0
        %1531 = vmatprep.subr.mxu0 0.0
        %1532 = vmatpush1.msra.mxu0 0.0
        %1533 = vmatprep.subr.mxu0 0.0
        %1534 = vmatpush1.msra.mxu0 0.0
        %1535 = vmatprep.subr.mxu0 0.0
        %1536 = vmatpush1.msra.mxu0 0.0
        %1537 = vmatprep.subr.mxu0 0.0
        %1538 = vmatpush1.msra.mxu0 0.0
        %1539 = vmatprep.subr.mxu0 0.0
        %1540 = vmatpush1.msra.mxu0 0.0
        %1541 = vmatprep.subr.mxu0 0.0
        %1542 = vmatpush1.msra.mxu0 0.0
        %1543 = vmatprep.mubr.f32.mxu0 0.0
        %1544 = vmatmul.mubr.f32.gmra.mrb[0].mxu0 %v1477
        %v1545 = vpop.f32.mrb[0].mxu0
        %v1546 = vadd.f32 0.0, %v1545
        %v1547 = vpop.f32.mrb[0].mxu0
        %1548 = vdwg.mxu0
        %v1549 = vld [vmem:[#allocation11 + $0x18] sm:$0xff]
        %v1551 = vsel %vm669, %v1546, 0
        %1553 = vmatprep.subr.mxu0 0.0
        %1554 = vmatpush1.msra.mxu0 %v1549
        %1555 = vmatprep.subr.mxu0 0.0
        %1556 = vmatpush1.msra.mxu0 0.0
        %1557 = vmatprep.subr.mxu0 0.0
        %1558 = vmatpush1.msra.mxu0 0.0
        %1559 = vmatprep.subr.mxu0 0.0
        %1560 = vmatpush1.msra.mxu0 0.0
        %1561 = vmatprep.subr.mxu0 0.0
        %1562 = vmatpush1.msra.mxu0 0.0
        %1563 = vmatprep.subr.mxu0 0.0
        %1564 = vmatpush1.msra.mxu0 0.0
        %1565 = vmatprep.subr.mxu0 0.0
        %1566 = vmatpush1.msra.mxu0 0.0
        %1567 = vmatprep.subr.mxu0 0.0
        %1568 = vmatpush1.msra.mxu0 0.0
        %1569 = vmatprep.subr.mxu0 0.0
        %1570 = vmatpush1.msra.mxu0 0.0
        %1571 = vmatprep.subr.mxu0 0.0
        %1572 = vmatpush1.msra.mxu0 0.0
        %1573 = vmatprep.subr.mxu0 0.0
        %1574 = vmatpush1.msra.mxu0 0.0
        %1575 = vmatprep.subr.mxu0 0.0
        %1576 = vmatpush1.msra.mxu0 0.0
        %1577 = vmatprep.subr.mxu0 0.0
        %1578 = vmatpush1.msra.mxu0 0.0
        %1579 = vmatprep.subr.mxu0 0.0
        %1580 = vmatpush1.msra.mxu0 0.0
        %1581 = vmatprep.subr.mxu0 0.0
        %1582 = vmatpush1.msra.mxu0 0.0
        %1583 = vmatprep.subr.mxu0 0.0
        %1584 = vmatpush1.msra.mxu0 0.0
        %1585 = vmatprep.subr.mxu0 0.0
        %1586 = vmatpush1.msra.mxu0 0.0
        %1587 = vmatprep.subr.mxu0 0.0
        %1588 = vmatpush1.msra.mxu0 0.0
        %1589 = vmatprep.subr.mxu0 0.0
        %1590 = vmatpush1.msra.mxu0 0.0
        %1591 = vmatprep.subr.mxu0 0.0
        %1592 = vmatpush1.msra.mxu0 0.0
        %1593 = vmatprep.subr.mxu0 0.0
        %1594 = vmatpush1.msra.mxu0 0.0
        %1595 = vmatprep.subr.mxu0 0.0
        %1596 = vmatpush1.msra.mxu0 0.0
        %1597 = vmatprep.subr.mxu0 0.0
        %1598 = vmatpush1.msra.mxu0 0.0
        %1599 = vmatprep.subr.mxu0 0.0
        %1600 = vmatpush1.msra.mxu0 0.0
        %1601 = vmatprep.subr.mxu0 0.0
        %1602 = vmatpush1.msra.mxu0 0.0
        %1603 = vmatprep.subr.mxu0 0.0
        %1604 = vmatpush1.msra.mxu0 0.0
        %1605 = vmatprep.subr.mxu0 0.0
        %1606 = vmatpush1.msra.mxu0 0.0
        %1607 = vmatprep.subr.mxu0 0.0
        %1608 = vmatpush1.msra.mxu0 0.0
        %1609 = vmatprep.subr.mxu0 0.0
        %1610 = vmatpush1.msra.mxu0 0.0
        %1611 = vmatprep.subr.mxu0 0.0
        %1612 = vmatpush1.msra.mxu0 0.0
        %1613 = vmatprep.subr.mxu0 0.0
        %1614 = vmatpush1.msra.mxu0 0.0
        %1615 = vmatprep.subr.mxu0 0.0
        %1616 = vmatpush1.msra.mxu0 0.0
        %1617 = vmatprep.mubr.f32.mxu0 0.0
        %1618 = vmatmul.mubr.f32.gmra.mrb[0].mxu0 %v1551
        %v1619 = vpop.f32.mrb[0].mxu0
        %v1620 = vadd.f32 0.0, %v1619
        %v1621 = vpop.f32.mrb[0].mxu0
        %1622 = vdwg.mxu0
        %v1623 = vadd.f32 %v1383, %v1620
        %v1624 = vld [vmem:[%s7] sm:$0x1]
        %v1626 = vlaneseq
        %v1627 = vshrl.u32 %v1626, 7
        %v1628 = vsub.s32 0, %v1627
        %v1629 = vrot.slane %v1624, %v1628
        %v1631 = vadd.f32 %v1623, %v1629
        %1632 = vst.msk [vmem:[%s428] sm:$0xff] %vm438, %v1631
        %s1633 = sand.u32 %s221, 1
        %s1634 = scalar_lea.sflag [#allocation4], %s1633
        %s1635 = sand.u32 %s221, 1
        %s1636 = smul.addr %s1635, 8
        %s1637 = scalar_lea.vmem [#allocation13], %s1636
        // Predicated region
        $region77: #{multi_headed_attention.1} parent=51 // pred_check
          %p1638 = pneg %p231
        $region78: #{multi_headed_attention.1} parent=51 // pred_check_branch
          %1640 = sbr.rel (%p1638) target = $region80
        $region79: #{multi_headed_attention.1} parent=51 // pred_region
          %s1642 = ssub.s32 128, 128
          %1643 = vsyncadd %s1634, %s1642
          %s1644 = smul.addr %s30, 128
          %s1645 = scalar_lea.hbm %s8, %s1644
          %s1647 = sshll.u32 %s1637, 4
          %s1648 = int_to_ptr.vmem [resolvable:$true] %s1647
          %1650 = dma.vmem_to_hbm [thread:$0]  %s1648, 128, %s1645, %s1634
        $region80: #{multi_headed_attention.1} parent=51 // pred_fallthru
          _
      $region52: #{multi_headed_attention.1} parent=5 // pred_fallthru
        _
      %p1651 = scmp.le.s32.totalorder 2, %s25
      // Predicated region
      $region81: #{multi_headed_attention.1} parent=5 // pred_check
        %p1652 = pneg %p1651
      $region82: #{multi_headed_attention.1} parent=5 // pred_check_branch
        %1654 = sbr.rel (%p1652) target = $region84
      $region83: #{multi_headed_attention.1} parent=5 // pred_region
        %s1655 = ssub.s32 %s25, 2
        // Predicated region
        $region85: #{multi_headed_attention.1} parent=83 // pred_check
          %p1656 = pneg %p237
        $region86: #{multi_headed_attention.1} parent=83 // pred_check_branch
          %1658 = sbr.rel (%p1656) target = $region88
        $region87: #{multi_headed_attention.1} parent=83 // pred_region
          %s1659 = sand.u32 %s222, 1
          %s1660 = scalar_lea.sflag [#allocation4], %s1659
          %s1661 = sand.u32 %s222, 1
          %s1662 = smul.addr %s1661, 8
          %s1663 = scalar_lea.vmem [#allocation13], %s1662
          %1664 = dma.done %s1660, 128
        $region88: #{multi_headed_attention.1} parent=83 // pred_fallthru
          _
      $region84: #{multi_headed_attention.1} parent=5 // pred_fallthru
        _
    $region6: #{multi_headed_attention.1} parent=1 // loop_footer
      %s29 = sadd.s32 1, %s25
    $region7: #{multi_headed_attention.1} parent=1 // loop_footer_branch
      %24 = sbr.rel target = $region3
    $region8: #{multi_headed_attention.1} parent=1 // loop_exit
      _
    %1665 = vsyncpa [#allocation3], 1
    %s1666 = scalar_lea.sflag [#allocation3], 1
    %1667 = vsyncpa %s1666, 1
    %1668 = vsyncpa [#allocation6], 1
    %s1669 = scalar_lea.sflag [#allocation6], 1
    %1670 = vsyncpa %s1669, 1
    %1671 = vsyncpa [#allocation9], 1
    %1672 = vsyncpa [#allocation12], 1
    %1673 = vsyncpa [#allocation4], 1
    %s1674 = scalar_lea.sflag [#allocation4], 1
    %1675 = vsyncpa %s1674, 1

</llo_original>
